<compile_context>
chip_gen: v6e
topology: v6e:2x2x1
jax: 0.10.0
libtpu: 0.0.40
codegen_flags: <defaults>
</compile_context>

<pallas_src>
import functools

import jax
import jax.numpy as jnp
from jax import lax
from jax.experimental import pallas as pl
from jax.experimental.pallas import tpu as pltpu


def _block_kernel(x_ref,
                  ln1_w_ref, ln1_b_ref,
                  wqkv_ref, wproj_ref, bproj_ref,
                  ln2_w_ref, ln2_b_ref,
                  w1_ref, b1_ref, w2_ref, b2_ref,
                  o_ref, *, num_heads, head_size, eps):
    """One transformer block applied to a single (T, C) sequence per grid step."""
    H, hs = num_heads, head_size
    HD = H * hs
    f32, bf16 = jnp.float32, jnp.bfloat16

    x = x_ref[0]                                   # (T, C) f32 — this sequence
    T, C = x.shape

    def layer_norm(v, w_ref, b_ref):
        mu = jnp.mean(v, axis=-1, keepdims=True)
        var = jnp.mean((v - mu) * (v - mu), axis=-1, keepdims=True)
        return (v - mu) * lax.rsqrt(var + eps) * w_ref[...] + b_ref[...]

    # ---- LayerNorm 1 + fused QKV projection (one lane-dense bf16 MXU pass) --
    xn1 = layer_norm(x, ln1_w_ref, ln1_b_ref)
    qkv = jnp.dot(xn1.astype(bf16), wqkv_ref[...],
                  preferred_element_type=f32)      # (T, 3*HD) f32

    # ---- per-head, per-sequence causal attention ----------------------------
    # Causal mask built once (per grid step), shared by all heads.
    row = lax.broadcasted_iota(jnp.int32, (T, T), 0)
    col = lax.broadcasted_iota(jnp.int32, (T, T), 1)
    causal = col <= row
    scale = float(hs) ** -0.5

    wproj = wproj_ref[...]                         # (HD, C) bf16, loaded once
    head_outs = []
    # Trace-time unrolled loop over the (small, static) head count.  The
    # output projection is accumulated per head, so no concatenate / reshape /
    # transpose is needed inside the kernel and every projection matmul has a
    # lane-dense N = C output.
    for h in range(H):
        q_h = qkv[:, h * hs:(h + 1) * hs].astype(bf16)                # (T, hs)
        k_h = qkv[:, HD + h * hs:HD + (h + 1) * hs].astype(bf16)      # (T, hs)
        v_h = qkv[:, 2 * HD + h * hs:2 * HD + (h + 1) * hs].astype(bf16)

        # scores: contract the head dim (no explicit transpose of k)
        s = lax.dot_general(q_h, k_h, (((1,), (1,)), ((), ())),
                            preferred_element_type=f32) * scale       # (T, T)
        s = jnp.where(causal, s, -jnp.inf)

        # per-head, per-row softmax (exact per-segment max; no underflow risk)
        m = jnp.max(s, axis=-1, keepdims=True)
        e = jnp.exp(s - m)
        denom = jnp.sum(e, axis=-1, keepdims=True)                    # XLU
        p = (e * pl.reciprocal(denom, approx=True)).astype(bf16)      # EUP+VPU

        att_h = jnp.dot(p, v_h, preferred_element_type=f32)           # (T, hs)
        head_outs.append(
            jnp.dot(att_h.astype(bf16), wproj[h * hs:(h + 1) * hs, :],
                    preferred_element_type=f32))                      # (T, C)

    sa = functools.reduce(lambda a, b: a + b, head_outs) + bproj_ref[...]
    x1 = x + sa                                    # residual 1

    # ---- LayerNorm 2 + FeedForward (Linear -> ReLU -> Linear) --------------
    xn2 = layer_norm(x1, ln2_w_ref, ln2_b_ref)
    h1 = jnp.dot(xn2.astype(bf16), w1_ref[...], preferred_element_type=f32)
    h1 = jnp.maximum(h1 + b1_ref[...], 0.0)
    ff = jnp.dot(h1.astype(bf16), w2_ref[...], preferred_element_type=f32)
    ff = ff + b2_ref[...]

    o_ref[0] = (x1 + ff).astype(o_ref.dtype)       # residual 2


def prepare_block_params(params):
    """One-time parameter preprocessing (do this at model init, NOT per call):
    fuse the per-head Q/K/V weights into a single (C, 3*HD) operand and
    pre-cast all matmul weights to bf16 for the MXU."""
    bf16 = jnp.bfloat16
    return {
        "ln1_w": params["ln1_w"], "ln1_b": params["ln1_b"],
        "wqkv": jnp.concatenate(
            [params["wq"], params["wk"], params["wv"]], axis=1).astype(bf16),
        "wproj": params["wproj"].astype(bf16), "bproj": params["bproj"],
        "ln2_w": params["ln2_w"], "ln2_b": params["ln2_b"],
        "w1": params["w1"].astype(bf16), "b1": params["b1"],
        "w2": params["w2"].astype(bf16), "b2": params["b2"],
    }


def block_forward(x, prepared, *, num_heads, head_size, eps=1e-5):
    """Pallas wrapper.  x: (B, T, C) float32, prepared = prepare_block_params(...)."""
    B, T, C = x.shape
    H, hs = num_heads, head_size
    HD = H * hs
    assert prepared["wproj"].shape[0] == HD
    F_dim = prepared["w1"].shape[-1]

    weight_args = [
        prepared["ln1_w"], prepared["ln1_b"],
        prepared["wqkv"], prepared["wproj"], prepared["bproj"],
        prepared["ln2_w"], prepared["ln2_b"],
        prepared["w1"], prepared["b1"], prepared["w2"], prepared["b2"],
    ]

    # One sequence per grid step; x/out blocks stream over the batch axis
    # while every weight uses a constant index_map (stays VMEM-resident, no
    # re-DMA across steps).  "parallel" lets megacore / v7x's two TensorCores
    # split the batch.
    in_specs = ([pl.BlockSpec((1, T, C), lambda b: (b, 0, 0))] +
                [pl.BlockSpec(w.shape, lambda b: (0, 0)) for w in weight_args])
    out_spec = pl.BlockSpec((1, T, C), lambda b: (b, 0, 0))

    flops = B * (2 * T * C * 3 * HD                 # QKV projection
                 + H * (2 * T * T * hs              # scores
                        + 2 * T * T * hs            # PV
                        + 2 * T * hs * C)           # output projection
                 + 2 * T * C * F_dim + 2 * T * F_dim * C)   # FFN
    transcendentals = B * (H * T * T + H * T + 4 * T)       # exp, recip, rsqrt
    bytes_accessed = int(2 * x.size * x.dtype.itemsize +
                         sum(w.size * w.dtype.itemsize for w in weight_args))

    kernel = functools.partial(_block_kernel, num_heads=H, head_size=hs, eps=eps)
    out = pl.pallas_call(
        kernel,
        out_shape=jax.ShapeDtypeStruct((B, T, C), x.dtype),
        grid=(B,),
        in_specs=in_specs,
        out_specs=out_spec,
        input_output_aliases={0: 0},          # output reuses the input slab
        compiler_params=pltpu.CompilerParams(
            dimension_semantics=("parallel",),
            vmem_limit_bytes=32 * 1024 * 1024),   # within v7x's 64 MiB VMEM
        cost_estimate=pl.CostEstimate(flops=flops,
                                      transcendentals=transcendentals,
                                      bytes_accessed=bytes_accessed),
    )(x, *weight_args)
    return out


# ---------------- pure-JAX f32 reference (mirrors the PyTorch forward) -------
def block_reference(x, params, *, num_heads, head_size, eps=1e-5):
    def layernorm(v, w, b):
        mu = jnp.mean(v, axis=-1, keepdims=True)
        var = jnp.mean((v - mu) ** 2, axis=-1, keepdims=True)
        return (v - mu) / jnp.sqrt(var + eps) * w + b

    B, T, C = x.shape
    hs = head_size
    xn1 = layernorm(x, params["ln1_w"], params["ln1_b"])
    q = xn1 @ params["wq"]
    k = xn1 @ params["wk"]
    v = xn1 @ params["wv"]
    mask = jnp.tril(jnp.ones((T, T), bool))
    outs = []
    for h in range(num_heads):
        sl = slice(h * hs, (h + 1) * hs)
        s = (q[..., sl] @ jnp.swapaxes(k[..., sl], -1, -2)) * hs ** -0.5
        s = jnp.where(mask, s, -jnp.inf)
        p = jax.nn.softmax(s, axis=-1)
        outs.append(p @ v[..., sl])
    att = jnp.concatenate(outs, axis=-1)
    sa = att @ params["wproj"] + params["bproj"]
    x1 = x + sa
    xn2 = layernorm(x1, params["ln2_w"], params["ln2_b"])
    ff = jnp.maximum(xn2 @ params["w1"] + params["b1"], 0.0) @ params["w2"] + params["b2"]
    return x1 + ff


if __name__ == "__main__":
    # Block hyper-parameters (small, but TPU lane friendly: C = 128 lanes)
    B, T = 2, 8                      # batch, block_size
    n_embd, n_head = 128, 4
    head_size = n_embd // n_head     # 32
    layer_index = 0
    num_qkv_heads = [4]              # overrides n_head for this layer -> 4
    ffn_intermediate_sizes = [256]
    H = num_qkv_heads[layer_index]
    F_dim = ffn_intermediate_sizes[layer_index]
    # dropout = 0.0 -> all nn.Dropout layers are identity

    key = jax.random.PRNGKey(0)
    ks = jax.random.split(key, 10)
    init = lambda k, shape: jax.random.normal(k, shape, jnp.float32) * 0.02

    params = {
        # LayerNorm params follow PyTorch defaults (weight=1, bias=0)
        "ln1_w": jnp.ones((1, n_embd), jnp.float32),
        "ln1_b": jnp.zeros((1, n_embd), jnp.float32),
        "ln2_w": jnp.ones((1, n_embd), jnp.float32),
        "ln2_b": jnp.zeros((1, n_embd), jnp.float32),
        # per-head K/Q/V weights concatenated along the output dim: (C, H*hs)
        "wq": init(ks[0], (n_embd, H * head_size)),
        "wk": init(ks[1], (n_embd, H * head_size)),
        "wv": init(ks[2], (n_embd, H * head_size)),
        # output projection (H*hs -> C) with bias
        "wproj": init(ks[3], (H * head_size, n_embd)),
        "bproj": init(ks[4], (1, n_embd)),
        # feed-forward
        "w1": init(ks[5], (n_embd, F_dim)),
        "b1": init(ks[6], (1, F_dim)),
        "w2": init(ks[7], (F_dim, n_embd)),
        "b2": init(ks[8], (1, n_embd)),
    }

    x = jax.random.normal(ks[9], (B, T, n_embd), jnp.float32)

    # Reference first (x's HBM slab may be aliased into the kernel's output).
    ref = block_reference(x, params, num_heads=H, head_size=head_size)

    prepared = prepare_block_params(params)      # one-time weight preprocessing
    out = jax.block_until_ready(
        block_forward(x, prepared, num_heads=H, head_size=head_size))

    assert out.shape == (B, T, n_embd)
    # bf16 MXU operands in the kernel vs. an f32 reference -> loosened tolerance
    assert jnp.allclose(out, ref, atol=2e-2, rtol=2e-2), \
        float(jnp.max(jnp.abs(out - ref)))
    print("KERNEL_OK")
</pallas_src>

<mosaic_0001>
module attributes {stable_mosaic.version = 11 : i64} {
  func.func @_block_kernel(%arg0: i32, %arg1: memref<1x8x128xf32, #tpu.memory_space<vmem>>, %arg2: memref<1x128xf32, #tpu.memory_space<vmem>>, %arg3: memref<1x128xf32, #tpu.memory_space<vmem>>, %arg4: memref<128x384xbf16, #tpu.memory_space<vmem>>, %arg5: memref<128x128xbf16, #tpu.memory_space<vmem>>, %arg6: memref<1x128xf32, #tpu.memory_space<vmem>>, %arg7: memref<1x128xf32, #tpu.memory_space<vmem>>, %arg8: memref<1x128xf32, #tpu.memory_space<vmem>>, %arg9: memref<128x256xbf16, #tpu.memory_space<vmem>>, %arg10: memref<1x256xf32, #tpu.memory_space<vmem>>, %arg11: memref<256x128xbf16, #tpu.memory_space<vmem>>, %arg12: memref<1x128xf32, #tpu.memory_space<vmem>>, %arg13: memref<1x8x128xf32, #tpu.memory_space<vmem>>) attributes {dimension_semantics = [#tpu.dimension_semantics<parallel>], iteration_bounds = array<i64: 2>, scalar_prefetch = 0 : i64, scratch_operands = 0 : i64, tpu.core_type = #tpu.core_type<tc>, window_params = [{transform_indices = @transform_0, window_bounds = array<i64: 1, 8, 128>}, {pipeline_mode = #tpu.pipeline_mode<synchronous>, transform_indices = @transform_1, window_bounds = array<i64: 1, 128>}, {pipeline_mode = #tpu.pipeline_mode<synchronous>, transform_indices = @transform_2, window_bounds = array<i64: 1, 128>}, {pipeline_mode = #tpu.pipeline_mode<synchronous>, transform_indices = @transform_3, window_bounds = array<i64: 128, 384>}, {pipeline_mode = #tpu.pipeline_mode<synchronous>, transform_indices = @transform_4, window_bounds = array<i64: 128, 128>}, {pipeline_mode = #tpu.pipeline_mode<synchronous>, transform_indices = @transform_5, window_bounds = array<i64: 1, 128>}, {pipeline_mode = #tpu.pipeline_mode<synchronous>, transform_indices = @transform_6, window_bounds = array<i64: 1, 128>}, {pipeline_mode = #tpu.pipeline_mode<synchronous>, transform_indices = @transform_7, window_bounds = array<i64: 1, 128>}, {pipeline_mode = #tpu.pipeline_mode<synchronous>, transform_indices = @transform_8, window_bounds = array<i64: 128, 256>}, {pipeline_mode = #tpu.pipeline_mode<synchronous>, transform_indices = @transform_9, window_bounds = array<i64: 1, 256>}, {pipeline_mode = #tpu.pipeline_mode<synchronous>, transform_indices = @transform_10, window_bounds = array<i64: 256, 128>}, {pipeline_mode = #tpu.pipeline_mode<synchronous>, transform_indices = @transform_11, window_bounds = array<i64: 1, 128>}, {transform_indices = @transform_12, window_bounds = array<i64: 1, 8, 128>}]} {
    %c0 = arith.constant 0 : index
    %c0_0 = arith.constant 0 : index
    %c0_1 = arith.constant 0 : index
    %0 = vector.load %arg1[%c0, %c0_0, %c0_1] : memref<1x8x128xf32, #tpu.memory_space<vmem>>, vector<1x8x128xf32>
    %1 = vector.shape_cast %0 : vector<1x8x128xf32> to vector<8x128xf32>
    %cst = arith.constant dense<0.000000e+00> : vector<8xf32>
    %2 = vector.multi_reduction <add>, %1, %cst [1] : vector<8x128xf32> to vector<8xf32>
    %3 = vector.shape_cast %2 : vector<8xf32> to vector<8x1xf32>
    %cst_2 = arith.constant 1.280000e+02 : f32
    %4 = vector.broadcast %cst_2 : f32 to vector<8x1xf32>
    %5 = arith.divf %3, %4 : vector<8x1xf32>
    %6 = vector.broadcast %5 : vector<8x1xf32> to vector<8x128xf32>
    %7 = arith.subf %1, %6 : vector<8x128xf32>
    %8 = vector.broadcast %5 : vector<8x1xf32> to vector<8x128xf32>
    %9 = arith.subf %1, %8 : vector<8x128xf32>
    %10 = arith.mulf %7, %9 : vector<8x128xf32>
    %cst_3 = arith.constant dense<0.000000e+00> : vector<8xf32>
    %11 = vector.multi_reduction <add>, %10, %cst_3 [1] : vector<8x128xf32> to vector<8xf32>
    %12 = vector.shape_cast %11 : vector<8xf32> to vector<8x1xf32>
    %cst_4 = arith.constant 1.280000e+02 : f32
    %13 = vector.broadcast %cst_4 : f32 to vector<8x1xf32>
    %14 = arith.divf %12, %13 : vector<8x1xf32>
    %15 = vector.broadcast %5 : vector<8x1xf32> to vector<8x128xf32>
    %16 = arith.subf %1, %15 : vector<8x128xf32>
    %cst_5 = arith.constant 9.99999974E-6 : f32
    %17 = vector.broadcast %cst_5 : f32 to vector<8x1xf32>
    %18 = arith.addf %14, %17 : vector<8x1xf32>
    %19 = math.rsqrt %18 : vector<8x1xf32>
    %20 = vector.broadcast %19 : vector<8x1xf32> to vector<8x128xf32>
    %21 = arith.mulf %16, %20 : vector<8x128xf32>
    %c0_6 = arith.constant 0 : index
    %c0_7 = arith.constant 0 : index
    %22 = vector.load %arg2[%c0_6, %c0_7] : memref<1x128xf32, #tpu.memory_space<vmem>>, vector<1x128xf32>
    %23 = vector.broadcast %22 : vector<1x128xf32> to vector<8x128xf32>
    %24 = arith.mulf %21, %23 : vector<8x128xf32>
    %c0_8 = arith.constant 0 : index
    %c0_9 = arith.constant 0 : index
    %25 = vector.load %arg3[%c0_8, %c0_9] : memref<1x128xf32, #tpu.memory_space<vmem>>, vector<1x128xf32>
    %26 = vector.broadcast %25 : vector<1x128xf32> to vector<8x128xf32>
    %27 = arith.addf %24, %26 : vector<8x128xf32>
    %28 = arith.truncf %27 : vector<8x128xf32> to vector<8x128xbf16>
    %c0_10 = arith.constant 0 : index
    %c0_11 = arith.constant 0 : index
    %29 = vector.load %arg4[%c0_10, %c0_11] : memref<128x384xbf16, #tpu.memory_space<vmem>>, vector<128x384xbf16>
    %cst_12 = arith.constant dense<0.000000e+00> : vector<8x384xf32>
    %30 = tpu.matmul %28, %29, %cst_12 {dimension_numbers = #tpu.dot_dimension_numbers<[1], [0], [0], [1], [0, 0, 1, 1], [], []>} : vector<8x128xbf16>, vector<128x384xbf16>, vector<8x384xf32> -> vector<8x384xf32>
    %31 = tpu.iota {dimensions = array<i32: 0>} : vector<8x8xi32>
    %32 = tpu.iota {dimensions = array<i32: 1>} : vector<8x8xi32>
    %33 = arith.cmpi sle, %32, %31 : vector<8x8xi32>
    %c0_13 = arith.constant 0 : index
    %c0_14 = arith.constant 0 : index
    %34 = vector.load %arg5[%c0_13, %c0_14] : memref<128x128xbf16, #tpu.memory_space<vmem>>, vector<128x128xbf16>
    %35 = vector.extract_strided_slice %30 {offsets = [0, 0], sizes = [8, 32], strides = [1, 1]} : vector<8x384xf32> to vector<8x32xf32>
    %36 = arith.truncf %35 : vector<8x32xf32> to vector<8x32xbf16>
    %37 = vector.extract_strided_slice %30 {offsets = [0, 128], sizes = [8, 32], strides = [1, 1]} : vector<8x384xf32> to vector<8x32xf32>
    %38 = arith.truncf %37 : vector<8x32xf32> to vector<8x32xbf16>
    %39 = vector.extract_strided_slice %30 {offsets = [0, 256], sizes = [8, 32], strides = [1, 1]} : vector<8x384xf32> to vector<8x32xf32>
    %40 = arith.truncf %39 : vector<8x32xf32> to vector<8x32xbf16>
    %cst_15 = arith.constant dense<0.000000e+00> : vector<8x8xf32>
    %41 = tpu.matmul %36, %38, %cst_15 {dimension_numbers = #tpu.dot_dimension_numbers<[1], [1], [0], [0], [0, 0, 1, 0], [], []>} : vector<8x32xbf16>, vector<8x32xbf16>, vector<8x8xf32> -> vector<8x8xf32>
    %cst_16 = arith.constant 0.176776692 : f32
    %42 = vector.broadcast %cst_16 : f32 to vector<8x8xf32>
    %43 = arith.mulf %41, %42 : vector<8x8xf32>
    %cst_17 = arith.constant 0xFF800000 : f32
    %44 = vector.broadcast %cst_17 : f32 to vector<8x8xf32>
    %45 = arith.select %33, %43, %44 : vector<8x8xi1>, vector<8x8xf32>
    %cst_18 = arith.constant dense<0xFF800000> : vector<8xf32>
    %46 = vector.multi_reduction <maximumf>, %45, %cst_18 [1] : vector<8x8xf32> to vector<8xf32>
    %47 = vector.shape_cast %46 : vector<8xf32> to vector<8x1xf32>
    %48 = vector.broadcast %47 : vector<8x1xf32> to vector<8x8xf32>
    %49 = arith.subf %45, %48 : vector<8x8xf32>
    %50 = math.exp %49 : vector<8x8xf32>
    %cst_19 = arith.constant dense<0.000000e+00> : vector<8xf32>
    %51 = vector.multi_reduction <add>, %50, %cst_19 [1] : vector<8x8xf32> to vector<8xf32>
    %52 = vector.shape_cast %51 : vector<8xf32> to vector<8x1xf32>
    %53 = tpu.reciprocal %52 {approx = true} : vector<8x1xf32> -> vector<8x1xf32>
    %54 = vector.broadcast %53 : vector<8x1xf32> to vector<8x8xf32>
    %55 = arith.mulf %50, %54 : vector<8x8xf32>
    %56 = arith.truncf %55 : vector<8x8xf32> to vector<8x8xbf16>
    %cst_20 = arith.constant dense<0.000000e+00> : vector<8x32xf32>
    %57 = tpu.matmul %56, %40, %cst_20 {dimension_numbers = #tpu.dot_dimension_numbers<[1], [0], [0], [1], [0, 0, 1, 1], [], []>} : vector<8x8xbf16>, vector<8x32xbf16>, vector<8x32xf32> -> vector<8x32xf32>
    %58 = arith.truncf %57 : vector<8x32xf32> to vector<8x32xbf16>
    %59 = vector.extract_strided_slice %34 {offsets = [0, 0], sizes = [32, 128], strides = [1, 1]} : vector<128x128xbf16> to vector<32x128xbf16>
    %cst_21 = arith.constant dense<0.000000e+00> : vector<8x128xf32>
    %60 = tpu.matmul %58, %59, %cst_21 {dimension_numbers = #tpu.dot_dimension_numbers<[1], [0], [0], [1], [0, 0, 1, 1], [], []>} : vector<8x32xbf16>, vector<32x128xbf16>, vector<8x128xf32> -> vector<8x128xf32>
    %61 = vector.extract_strided_slice %30 {offsets = [0, 32], sizes = [8, 32], strides = [1, 1]} : vector<8x384xf32> to vector<8x32xf32>
    %62 = arith.truncf %61 : vector<8x32xf32> to vector<8x32xbf16>
    %63 = vector.extract_strided_slice %30 {offsets = [0, 160], sizes = [8, 32], strides = [1, 1]} : vector<8x384xf32> to vector<8x32xf32>
    %64 = arith.truncf %63 : vector<8x32xf32> to vector<8x32xbf16>
    %65 = vector.extract_strided_slice %30 {offsets = [0, 288], sizes = [8, 32], strides = [1, 1]} : vector<8x384xf32> to vector<8x32xf32>
    %66 = arith.truncf %65 : vector<8x32xf32> to vector<8x32xbf16>
    %cst_22 = arith.constant dense<0.000000e+00> : vector<8x8xf32>
    %67 = tpu.matmul %62, %64, %cst_22 {dimension_numbers = #tpu.dot_dimension_numbers<[1], [1], [0], [0], [0, 0, 1, 0], [], []>} : vector<8x32xbf16>, vector<8x32xbf16>, vector<8x8xf32> -> vector<8x8xf32>
    %cst_23 = arith.constant 0.176776692 : f32
    %68 = vector.broadcast %cst_23 : f32 to vector<8x8xf32>
    %69 = arith.mulf %67, %68 : vector<8x8xf32>
    %cst_24 = arith.constant 0xFF800000 : f32
    %70 = vector.broadcast %cst_24 : f32 to vector<8x8xf32>
    %71 = arith.select %33, %69, %70 : vector<8x8xi1>, vector<8x8xf32>
    %cst_25 = arith.constant dense<0xFF800000> : vector<8xf32>
    %72 = vector.multi_reduction <maximumf>, %71, %cst_25 [1] : vector<8x8xf32> to vector<8xf32>
    %73 = vector.shape_cast %72 : vector<8xf32> to vector<8x1xf32>
    %74 = vector.broadcast %73 : vector<8x1xf32> to vector<8x8xf32>
    %75 = arith.subf %71, %74 : vector<8x8xf32>
    %76 = math.exp %75 : vector<8x8xf32>
    %cst_26 = arith.constant dense<0.000000e+00> : vector<8xf32>
    %77 = vector.multi_reduction <add>, %76, %cst_26 [1] : vector<8x8xf32> to vector<8xf32>
    %78 = vector.shape_cast %77 : vector<8xf32> to vector<8x1xf32>
    %79 = tpu.reciprocal %78 {approx = true} : vector<8x1xf32> -> vector<8x1xf32>
    %80 = vector.broadcast %79 : vector<8x1xf32> to vector<8x8xf32>
    %81 = arith.mulf %76, %80 : vector<8x8xf32>
    %82 = arith.truncf %81 : vector<8x8xf32> to vector<8x8xbf16>
    %cst_27 = arith.constant dense<0.000000e+00> : vector<8x32xf32>
    %83 = tpu.matmul %82, %66, %cst_27 {dimension_numbers = #tpu.dot_dimension_numbers<[1], [0], [0], [1], [0, 0, 1, 1], [], []>} : vector<8x8xbf16>, vector<8x32xbf16>, vector<8x32xf32> -> vector<8x32xf32>
    %84 = arith.truncf %83 : vector<8x32xf32> to vector<8x32xbf16>
    %85 = vector.extract_strided_slice %34 {offsets = [32, 0], sizes = [32, 128], strides = [1, 1]} : vector<128x128xbf16> to vector<32x128xbf16>
    %cst_28 = arith.constant dense<0.000000e+00> : vector<8x128xf32>
    %86 = tpu.matmul %84, %85, %cst_28 {dimension_numbers = #tpu.dot_dimension_numbers<[1], [0], [0], [1], [0, 0, 1, 1], [], []>} : vector<8x32xbf16>, vector<32x128xbf16>, vector<8x128xf32> -> vector<8x128xf32>
    %87 = vector.extract_strided_slice %30 {offsets = [0, 64], sizes = [8, 32], strides = [1, 1]} : vector<8x384xf32> to vector<8x32xf32>
    %88 = arith.truncf %87 : vector<8x32xf32> to vector<8x32xbf16>
    %89 = vector.extract_strided_slice %30 {offsets = [0, 192], sizes = [8, 32], strides = [1, 1]} : vector<8x384xf32> to vector<8x32xf32>
    %90 = arith.truncf %89 : vector<8x32xf32> to vector<8x32xbf16>
    %91 = vector.extract_strided_slice %30 {offsets = [0, 320], sizes = [8, 32], strides = [1, 1]} : vector<8x384xf32> to vector<8x32xf32>
    %92 = arith.truncf %91 : vector<8x32xf32> to vector<8x32xbf16>
    %cst_29 = arith.constant dense<0.000000e+00> : vector<8x8xf32>
    %93 = tpu.matmul %88, %90, %cst_29 {dimension_numbers = #tpu.dot_dimension_numbers<[1], [1], [0], [0], [0, 0, 1, 0], [], []>} : vector<8x32xbf16>, vector<8x32xbf16>, vector<8x8xf32> -> vector<8x8xf32>
    %cst_30 = arith.constant 0.176776692 : f32
    %94 = vector.broadcast %cst_30 : f32 to vector<8x8xf32>
    %95 = arith.mulf %93, %94 : vector<8x8xf32>
    %cst_31 = arith.constant 0xFF800000 : f32
    %96 = vector.broadcast %cst_31 : f32 to vector<8x8xf32>
    %97 = arith.select %33, %95, %96 : vector<8x8xi1>, vector<8x8xf32>
    %cst_32 = arith.constant dense<0xFF800000> : vector<8xf32>
    %98 = vector.multi_reduction <maximumf>, %97, %cst_32 [1] : vector<8x8xf32> to vector<8xf32>
    %99 = vector.shape_cast %98 : vector<8xf32> to vector<8x1xf32>
    %100 = vector.broadcast %99 : vector<8x1xf32> to vector<8x8xf32>
    %101 = arith.subf %97, %100 : vector<8x8xf32>
    %102 = math.exp %101 : vector<8x8xf32>
    %cst_33 = arith.constant dense<0.000000e+00> : vector<8xf32>
    %103 = vector.multi_reduction <add>, %102, %cst_33 [1] : vector<8x8xf32> to vector<8xf32>
    %104 = vector.shape_cast %103 : vector<8xf32> to vector<8x1xf32>
    %105 = tpu.reciprocal %104 {approx = true} : vector<8x1xf32> -> vector<8x1xf32>
    %106 = vector.broadcast %105 : vector<8x1xf32> to vector<8x8xf32>
    %107 = arith.mulf %102, %106 : vector<8x8xf32>
    %108 = arith.truncf %107 : vector<8x8xf32> to vector<8x8xbf16>
    %cst_34 = arith.constant dense<0.000000e+00> : vector<8x32xf32>
    %109 = tpu.matmul %108, %92, %cst_34 {dimension_numbers = #tpu.dot_dimension_numbers<[1], [0], [0], [1], [0, 0, 1, 1], [], []>} : vector<8x8xbf16>, vector<8x32xbf16>, vector<8x32xf32> -> vector<8x32xf32>
    %110 = arith.truncf %109 : vector<8x32xf32> to vector<8x32xbf16>
    %111 = vector.extract_strided_slice %34 {offsets = [64, 0], sizes = [32, 128], strides = [1, 1]} : vector<128x128xbf16> to vector<32x128xbf16>
    %cst_35 = arith.constant dense<0.000000e+00> : vector<8x128xf32>
    %112 = tpu.matmul %110, %111, %cst_35 {dimension_numbers = #tpu.dot_dimension_numbers<[1], [0], [0], [1], [0, 0, 1, 1], [], []>} : vector<8x32xbf16>, vector<32x128xbf16>, vector<8x128xf32> -> vector<8x128xf32>
    %113 = vector.extract_strided_slice %30 {offsets = [0, 96], sizes = [8, 32], strides = [1, 1]} : vector<8x384xf32> to vector<8x32xf32>
    %114 = arith.truncf %113 : vector<8x32xf32> to vector<8x32xbf16>
    %115 = vector.extract_strided_slice %30 {offsets = [0, 224], sizes = [8, 32], strides = [1, 1]} : vector<8x384xf32> to vector<8x32xf32>
    %116 = arith.truncf %115 : vector<8x32xf32> to vector<8x32xbf16>
    %117 = vector.extract_strided_slice %30 {offsets = [0, 352], sizes = [8, 32], strides = [1, 1]} : vector<8x384xf32> to vector<8x32xf32>
    %118 = arith.truncf %117 : vector<8x32xf32> to vector<8x32xbf16>
    %cst_36 = arith.constant dense<0.000000e+00> : vector<8x8xf32>
    %119 = tpu.matmul %114, %116, %cst_36 {dimension_numbers = #tpu.dot_dimension_numbers<[1], [1], [0], [0], [0, 0, 1, 0], [], []>} : vector<8x32xbf16>, vector<8x32xbf16>, vector<8x8xf32> -> vector<8x8xf32>
    %cst_37 = arith.constant 0.176776692 : f32
    %120 = vector.broadcast %cst_37 : f32 to vector<8x8xf32>
    %121 = arith.mulf %119, %120 : vector<8x8xf32>
    %cst_38 = arith.constant 0xFF800000 : f32
    %122 = vector.broadcast %cst_38 : f32 to vector<8x8xf32>
    %123 = arith.select %33, %121, %122 : vector<8x8xi1>, vector<8x8xf32>
    %cst_39 = arith.constant dense<0xFF800000> : vector<8xf32>
    %124 = vector.multi_reduction <maximumf>, %123, %cst_39 [1] : vector<8x8xf32> to vector<8xf32>
    %125 = vector.shape_cast %124 : vector<8xf32> to vector<8x1xf32>
    %126 = vector.broadcast %125 : vector<8x1xf32> to vector<8x8xf32>
    %127 = arith.subf %123, %126 : vector<8x8xf32>
    %128 = math.exp %127 : vector<8x8xf32>
    %cst_40 = arith.constant dense<0.000000e+00> : vector<8xf32>
    %129 = vector.multi_reduction <add>, %128, %cst_40 [1] : vector<8x8xf32> to vector<8xf32>
    %130 = vector.shape_cast %129 : vector<8xf32> to vector<8x1xf32>
    %131 = tpu.reciprocal %130 {approx = true} : vector<8x1xf32> -> vector<8x1xf32>
    %132 = vector.broadcast %131 : vector<8x1xf32> to vector<8x8xf32>
    %133 = arith.mulf %128, %132 : vector<8x8xf32>
    %134 = arith.truncf %133 : vector<8x8xf32> to vector<8x8xbf16>
    %cst_41 = arith.constant dense<0.000000e+00> : vector<8x32xf32>
    %135 = tpu.matmul %134, %118, %cst_41 {dimension_numbers = #tpu.dot_dimension_numbers<[1], [0], [0], [1], [0, 0, 1, 1], [], []>} : vector<8x8xbf16>, vector<8x32xbf16>, vector<8x32xf32> -> vector<8x32xf32>
    %136 = arith.truncf %135 : vector<8x32xf32> to vector<8x32xbf16>
    %137 = vector.extract_strided_slice %34 {offsets = [96, 0], sizes = [32, 128], strides = [1, 1]} : vector<128x128xbf16> to vector<32x128xbf16>
    %cst_42 = arith.constant dense<0.000000e+00> : vector<8x128xf32>
    %138 = tpu.matmul %136, %137, %cst_42 {dimension_numbers = #tpu.dot_dimension_numbers<[1], [0], [0], [1], [0, 0, 1, 1], [], []>} : vector<8x32xbf16>, vector<32x128xbf16>, vector<8x128xf32> -> vector<8x128xf32>
    %139 = arith.addf %60, %86 : vector<8x128xf32>
    %140 = arith.addf %139, %112 : vector<8x128xf32>
    %141 = arith.addf %140, %138 : vector<8x128xf32>
    %c0_43 = arith.constant 0 : index
    %c0_44 = arith.constant 0 : index
    %142 = vector.load %arg6[%c0_43, %c0_44] : memref<1x128xf32, #tpu.memory_space<vmem>>, vector<1x128xf32>
    %143 = vector.broadcast %142 : vector<1x128xf32> to vector<8x128xf32>
    %144 = arith.addf %141, %143 : vector<8x128xf32>
    %145 = arith.addf %1, %144 : vector<8x128xf32>
    %cst_45 = arith.constant dense<0.000000e+00> : vector<8xf32>
    %146 = vector.multi_reduction <add>, %145, %cst_45 [1] : vector<8x128xf32> to vector<8xf32>
    %147 = vector.shape_cast %146 : vector<8xf32> to vector<8x1xf32>
    %cst_46 = arith.constant 1.280000e+02 : f32
    %148 = vector.broadcast %cst_46 : f32 to vector<8x1xf32>
    %149 = arith.divf %147, %148 : vector<8x1xf32>
    %150 = vector.broadcast %149 : vector<8x1xf32> to vector<8x128xf32>
    %151 = arith.subf %145, %150 : vector<8x128xf32>
    %152 = vector.broadcast %149 : vector<8x1xf32> to vector<8x128xf32>
    %153 = arith.subf %145, %152 : vector<8x128xf32>
    %154 = arith.mulf %151, %153 : vector<8x128xf32>
    %cst_47 = arith.constant dense<0.000000e+00> : vector<8xf32>
    %155 = vector.multi_reduction <add>, %154, %cst_47 [1] : vector<8x128xf32> to vector<8xf32>
    %156 = vector.shape_cast %155 : vector<8xf32> to vector<8x1xf32>
    %cst_48 = arith.constant 1.280000e+02 : f32
    %157 = vector.broadcast %cst_48 : f32 to vector<8x1xf32>
    %158 = arith.divf %156, %157 : vector<8x1xf32>
    %159 = vector.broadcast %149 : vector<8x1xf32> to vector<8x128xf32>
    %160 = arith.subf %145, %159 : vector<8x128xf32>
    %cst_49 = arith.constant 9.99999974E-6 : f32
    %161 = vector.broadcast %cst_49 : f32 to vector<8x1xf32>
    %162 = arith.addf %158, %161 : vector<8x1xf32>
    %163 = math.rsqrt %162 : vector<8x1xf32>
    %164 = vector.broadcast %163 : vector<8x1xf32> to vector<8x128xf32>
    %165 = arith.mulf %160, %164 : vector<8x128xf32>
    %c0_50 = arith.constant 0 : index
    %c0_51 = arith.constant 0 : index
    %166 = vector.load %arg7[%c0_50, %c0_51] : memref<1x128xf32, #tpu.memory_space<vmem>>, vector<1x128xf32>
    %167 = vector.broadcast %166 : vector<1x128xf32> to vector<8x128xf32>
    %168 = arith.mulf %165, %167 : vector<8x128xf32>
    %c0_52 = arith.constant 0 : index
    %c0_53 = arith.constant 0 : index
    %169 = vector.load %arg8[%c0_52, %c0_53] : memref<1x128xf32, #tpu.memory_space<vmem>>, vector<1x128xf32>
    %170 = vector.broadcast %169 : vector<1x128xf32> to vector<8x128xf32>
    %171 = arith.addf %168, %170 : vector<8x128xf32>
    %172 = arith.truncf %171 : vector<8x128xf32> to vector<8x128xbf16>
    %c0_54 = arith.constant 0 : index
    %c0_55 = arith.constant 0 : index
    %173 = vector.load %arg9[%c0_54, %c0_55] : memref<128x256xbf16, #tpu.memory_space<vmem>>, vector<128x256xbf16>
    %cst_56 = arith.constant dense<0.000000e+00> : vector<8x256xf32>
    %174 = tpu.matmul %172, %173, %cst_56 {dimension_numbers = #tpu.dot_dimension_numbers<[1], [0], [0], [1], [0, 0, 1, 1], [], []>} : vector<8x128xbf16>, vector<128x256xbf16>, vector<8x256xf32> -> vector<8x256xf32>
    %c0_57 = arith.constant 0 : index
    %c0_58 = arith.constant 0 : index
    %175 = vector.load %arg10[%c0_57, %c0_58] : memref<1x256xf32, #tpu.memory_space<vmem>>, vector<1x256xf32>
    %176 = vector.broadcast %175 : vector<1x256xf32> to vector<8x256xf32>
    %177 = arith.addf %174, %176 : vector<8x256xf32>
    %cst_59 = arith.constant 0.000000e+00 : f32
    %178 = vector.broadcast %cst_59 : f32 to vector<8x256xf32>
    %179 = arith.maximumf %177, %178 : vector<8x256xf32>
    %180 = arith.truncf %179 : vector<8x256xf32> to vector<8x256xbf16>
    %c0_60 = arith.constant 0 : index
    %c0_61 = arith.constant 0 : index
    %181 = vector.load %arg11[%c0_60, %c0_61] : memref<256x128xbf16, #tpu.memory_space<vmem>>, vector<256x128xbf16>
    %cst_62 = arith.constant dense<0.000000e+00> : vector<8x128xf32>
    %182 = tpu.matmul %180, %181, %cst_62 {dimension_numbers = #tpu.dot_dimension_numbers<[1], [0], [0], [1], [0, 0, 1, 1], [], []>} : vector<8x256xbf16>, vector<256x128xbf16>, vector<8x128xf32> -> vector<8x128xf32>
    %c0_63 = arith.constant 0 : index
    %c0_64 = arith.constant 0 : index
    %183 = vector.load %arg12[%c0_63, %c0_64] : memref<1x128xf32, #tpu.memory_space<vmem>>, vector<1x128xf32>
    %184 = vector.broadcast %183 : vector<1x128xf32> to vector<8x128xf32>
    %185 = arith.addf %182, %184 : vector<8x128xf32>
    %186 = arith.addf %145, %185 : vector<8x128xf32>
    %c0_65 = arith.constant 0 : index
    %c0_66 = arith.constant 0 : index
    %c0_67 = arith.constant 0 : index
    %187 = vector.load %arg13[%c0_65, %c0_66, %c0_67] : memref<1x8x128xf32, #tpu.memory_space<vmem>>, vector<1x8x128xf32>
    %188 = vector.shape_cast %187 : vector<1x8x128xf32> to vector<8x128xf32>
    %189 = vector.shape_cast %186 : vector<8x128xf32> to vector<1x8x128xf32>
    tpu.vector_store %arg13[%c0_65, %c0_66, %c0_67], %189 {strides = array<i32>} : memref<1x8x128xf32, #tpu.memory_space<vmem>>, vector<1x8x128xf32>,
    return
  }
  func.func @transform_0(%arg0: i32) -> (i32, i32, i32) {
    %c0_i32 = arith.constant 0 : i32
    %c0_i32_0 = arith.constant 0 : i32
    %c0_i32_1 = arith.constant 0 : i32
    return %arg0, %c0_i32, %c0_i32_0 : i32, i32, i32
  }
  func.func @transform_1(%arg0: i32) -> (i32, i32) {
    %c0_i32 = arith.constant 0 : i32
    %c0_i32_0 = arith.constant 0 : i32
    %c0_i32_1 = arith.constant 0 : i32
    return %c0_i32, %c0_i32_0 : i32, i32
  }
  func.func @transform_2(%arg0: i32) -> (i32, i32) {
    %c0_i32 = arith.constant 0 : i32
    %c0_i32_0 = arith.constant 0 : i32
    %c0_i32_1 = arith.constant 0 : i32
    return %c0_i32, %c0_i32_0 : i32, i32
  }
  func.func @transform_3(%arg0: i32) -> (i32, i32) {
    %c0_i32 = arith.constant 0 : i32
    %c0_i32_0 = arith.constant 0 : i32
    %c0_i32_1 = arith.constant 0 : i32
    return %c0_i32, %c0_i32_0 : i32, i32
  }
  func.func @transform_4(%arg0: i32) -> (i32, i32) {
    %c0_i32 = arith.constant 0 : i32
    %c0_i32_0 = arith.constant 0 : i32
    %c0_i32_1 = arith.constant 0 : i32
    return %c0_i32, %c0_i32_0 : i32, i32
  }
  func.func @transform_5(%arg0: i32) -> (i32, i32) {
    %c0_i32 = arith.constant 0 : i32
    %c0_i32_0 = arith.constant 0 : i32
    %c0_i32_1 = arith.constant 0 : i32
    return %c0_i32, %c0_i32_0 : i32, i32
  }
  func.func @transform_6(%arg0: i32) -> (i32, i32) {
    %c0_i32 = arith.constant 0 : i32
    %c0_i32_0 = arith.constant 0 : i32
    %c0_i32_1 = arith.constant 0 : i32
    return %c0_i32, %c0_i32_0 : i32, i32
  }
  func.func @transform_7(%arg0: i32) -> (i32, i32) {
    %c0_i32 = arith.constant 0 : i32
    %c0_i32_0 = arith.constant 0 : i32
    %c0_i32_1 = arith.constant 0 : i32
    return %c0_i32, %c0_i32_0 : i32, i32
  }
  func.func @transform_8(%arg0: i32) -> (i32, i32) {
    %c0_i32 = arith.constant 0 : i32
    %c0_i32_0 = arith.constant 0 : i32
    %c0_i32_1 = arith.constant 0 : i32
    return %c0_i32, %c0_i32_0 : i32, i32
  }
  func.func @transform_9(%arg0: i32) -> (i32, i32) {
    %c0_i32 = arith.constant 0 : i32
    %c0_i32_0 = arith.constant 0 : i32
    %c0_i32_1 = arith.constant 0 : i32
    return %c0_i32, %c0_i32_0 : i32, i32
  }
  func.func @transform_10(%arg0: i32) -> (i32, i32) {
    %c0_i32 = arith.constant 0 : i32
    %c0_i32_0 = arith.constant 0 : i32
    %c0_i32_1 = arith.constant 0 : i32
    return %c0_i32, %c0_i32_0 : i32, i32
  }
  func.func @transform_11(%arg0: i32) -> (i32, i32) {
    %c0_i32 = arith.constant 0 : i32
    %c0_i32_0 = arith.constant 0 : i32
    %c0_i32_1 = arith.constant 0 : i32
    return %c0_i32, %c0_i32_0 : i32, i32
  }
  func.func @transform_12(%arg0: i32) -> (i32, i32, i32) {
    %c0_i32 = arith.constant 0 : i32
    %c0_i32_0 = arith.constant 0 : i32
    %c0_i32_1 = arith.constant 0 : i32
    return %arg0, %c0_i32, %c0_i32_0 : i32, i32, i32
  }
}

</mosaic_0001>

<llo_original>
// kernel: tpu_custom_call.1
$region0: #{tpu_custom_call.1}
  #allocation0 [shape = 'u32[]', space=smem, size = 0x4, offset = 0x4, fixed_abs, tag = 'smem constant byte address 0x4 - core index']
  #allocation1 [shape = 'u32[144,128]{1,0:T(1,128)}', space=vmem, size = 0x12000, scoped, tag = 'internal scratch']
  %s0 = inlined_call_operand.hbm [shape: f32[2,8,128], index: 0, kind: input, shape index: {}, may-alias: {0,12}]
  %s1 = inlined_call_operand.vmem [shape: f32[1,128], index: 1, kind: input, shape index: {}]
  %s2 = inlined_call_operand.vmem [shape: f32[1,128], index: 2, kind: input, shape index: {}]
  %s3 = inlined_call_operand.hbm [shape: bf16[128,384], index: 3, kind: input, shape index: {}]
  %s4 = inlined_call_operand.hbm [shape: bf16[128,128], index: 4, kind: input, shape index: {}]
  %s5 = inlined_call_operand.vmem [shape: f32[1,128], index: 5, kind: input, shape index: {}]
  %s6 = inlined_call_operand.vmem [shape: f32[1,128], index: 6, kind: input, shape index: {}]
  %s7 = inlined_call_operand.vmem [shape: f32[1,128], index: 7, kind: input, shape index: {}]
  %s8 = inlined_call_operand.hbm [shape: bf16[128,256], index: 8, kind: input, shape index: {}]
  %s9 = inlined_call_operand.vmem [shape: f32[1,256], index: 9, kind: input, shape index: {}]
  %s10 = inlined_call_operand.hbm [shape: bf16[256,128], index: 10, kind: input, shape index: {}]
  %s11 = inlined_call_operand.vmem [shape: f32[1,128], index: 11, kind: input, shape index: {}]
  %s12 = inlined_call_operand.hbm [shape: f32[2,8,128], index: 12, kind: output, shape index: {}, may-alias: {0,12}]
  %s13 = sld [smem:[#allocation0]]
  $region101: #{tpu_custom_call.1} parent=0
    _
  %s15 = ssub.s32 1, %s13
  %s16 = scalar_select 0, %s15, %s13
  $region1: #{tpu_custom_call.1} parent=0
    #allocation2 [shape = 'u8[8192]{0}', space=vmem, size = 0x2000, scoped, tag = 'input window, operand 0']
    #allocation3 [shape = 's32[2]{0}', space=sflag, size = 0x8, scoped, tag = 'scoped memory for tpu_custom_call.1']
    #allocation4 [shape = 's32[2]{0}', space=sflag, size = 0x8, scoped, tag = 'scoped memory for tpu_custom_call.1']
    #allocation5 [shape = 'u8[98304]{0}', space=vmem, size = 0x18000, scoped, tag = 'input window, operand 3, single buffered']
    #allocation6 [shape = 's32[1]{0}', space=sflag, size = 0x4, scoped, tag = 'scoped memory for tpu_custom_call.1']
    #allocation7 [shape = 'u8[32768]{0}', space=vmem, size = 0x8000, scoped, tag = 'input window, operand 4, single buffered']
    #allocation8 [shape = 'u8[65536]{0}', space=vmem, size = 0x10000, scoped, tag = 'input window, operand 8, single buffered']
    #allocation9 [shape = 's32[1]{0}', space=sflag, size = 0x4, scoped, tag = 'scoped memory for tpu_custom_call.1']
    #allocation10 [shape = 'u8[65536]{0}', space=vmem, size = 0x10000, scoped, tag = 'input window, operand 10, single buffered']
    #allocation11 [shape = 'u8[8192]{0}', space=vmem, size = 0x2000, scoped, tag = 'output window, operand 0']
    %17 = vsyncpa [#allocation3], 0
    %s18 = scalar_lea.sflag [#allocation3], 1
    %19 = vsyncpa %s18, 0
    %20 = vsyncpa [#allocation6], 0
    %21 = vsyncpa [#allocation9], 0
    %22 = vsyncpa [#allocation4], 0
    %s23 = scalar_lea.sflag [#allocation4], 1
    %24 = vsyncpa %s23, 0
    loop: start=0, step=1, limit=4
    $region2: #{tpu_custom_call.1} parent=1 // loop_pre_header
      _
    $region3: #{tpu_custom_call.1} parent=1 // loop_header
      %s26 = sphi 0, %s30
      %p27 = scmp.ge.s32.totalorder %s26, 4
      %s36 = sphi 0, %s38
      %s39 = sphi 0, %s36
      %s40 = sphi 0, %s39
      %s56 = sphi 0, %s40
      %s60 = sphi 0, %s60
      %s62 = sphi 0, %s60
      %s63 = sphi 0, %s62
      %s77 = sphi 0, %s63
      %s81 = sphi 0, %s81
      %s83 = sphi 0, %s81
      %s84 = sphi 0, %s83
      %s98 = sphi 0, %s84
      %s102 = sphi 0, %s102
      %s104 = sphi 0, %s102
      %s105 = sphi 0, %s104
      %s119 = sphi 0, %s105
      %s123 = sphi 0, %s123
      %s125 = sphi 0, %s123
      %s126 = sphi 0, %s125
      %s140 = sphi 0, %s126
      %s144 = sphi 0, %s144
      %s146 = sphi 0, %s144
      %s147 = sphi 0, %s146
      %s161 = sphi 0, %s147
      %s165 = sphi 0, %s165
      %s167 = sphi 0, %s165
      %s168 = sphi 0, %s167
      %s182 = sphi 0, %s168
      %s186 = sphi 0, %s186
      %s188 = sphi 0, %s186
      %s189 = sphi 0, %s188
      %s203 = sphi 0, %s189
      %s207 = sphi 0, %s207
      %s209 = sphi 0, %s207
      %s210 = sphi 0, %s209
      %s224 = sphi 0, %s210
      %s228 = sphi 0, %s228
      %s230 = sphi 0, %s228
      %s231 = sphi 0, %s230
      %s245 = sphi 0, %s231
      %s249 = sphi 0, %s249
      %s251 = sphi 0, %s249
      %s252 = sphi 0, %s251
      %s266 = sphi 0, %s252
      %s270 = sphi 0, %s270
      %s272 = sphi 0, %s270
      %s273 = sphi 0, %s272
      %s287 = sphi 0, %s273
      %s293 = sphi 0, %s295
      %s296 = sphi 0, %s293
      %s297 = sphi 0, %s296
      %s313 = sphi 0, %s297
    $region4: #{tpu_custom_call.1} parent=1 // loop_header_branch
      %29 = sbr.rel (%p27) target = $region8
    $region5: #{tpu_custom_call.1} parent=1 // loop_body
      %s31 = ssub.s32 %s26, 1
      %s32 = ssub.s32 %s26, 2
      %s33 = sadd.s32 %s26, 1
      %s34 = ssub.s32 %s26, %s33
      %p35 = scmp.eq.s32.totalorder %s34, 0
      %s37 = sadd.s32 %s36, 1
      %s38 = scalar_select %p35, %s36, %s37
      %p41 = pneg %p35
      %p42 = scmp.eq.s32.totalorder %s26, 1
      %p43 = por %p41, %p42
      %p44 = scmp.ne.s32.totalorder %s36, %s39
      %p45 = scmp.eq.s32.totalorder %s26, 0
      %p46 = por %p44, %p45
      %p47 = scmp.ne.s32.totalorder %s36, %s39
      %p48 = scmp.eq.s32.totalorder %s31, 1
      %p49 = por %p47, %p48
      %p50 = scmp.ne.s32.totalorder %s39, %s40
      %p51 = scmp.eq.s32.totalorder %s31, 0
      %p52 = por %p50, %p51
      %p53 = scmp.ne.s32.totalorder %s39, %s40
      %p54 = scmp.eq.s32.totalorder %s32, 1
      %p55 = por %p53, %p54
      %p57 = scmp.ne.s32.totalorder %s40, %s56
      %p58 = scmp.eq.s32.totalorder %s32, 0
      %p59 = por %p57, %p58
      %s61 = sadd.s32 %s60, 1
      %p64 = scmp.eq.s32.totalorder %s26, 1
      %p65 = scmp.ne.s32.totalorder %s60, %s62
      %p66 = scmp.eq.s32.totalorder %s26, 0
      %p67 = por %p65, %p66
      %p68 = scmp.ne.s32.totalorder %s60, %s62
      %p69 = scmp.eq.s32.totalorder %s31, 1
      %p70 = por %p68, %p69
      %p71 = scmp.ne.s32.totalorder %s62, %s63
      %p72 = scmp.eq.s32.totalorder %s31, 0
      %p73 = por %p71, %p72
      %p74 = scmp.ne.s32.totalorder %s62, %s63
      %p75 = scmp.eq.s32.totalorder %s32, 1
      %p76 = por %p74, %p75
      %p78 = scmp.ne.s32.totalorder %s63, %s77
      %p79 = scmp.eq.s32.totalorder %s32, 0
      %p80 = por %p78, %p79
      %s82 = sadd.s32 %s81, 1
      %p85 = scmp.eq.s32.totalorder %s26, 1
      %p86 = scmp.ne.s32.totalorder %s81, %s83
      %p87 = scmp.eq.s32.totalorder %s26, 0
      %p88 = por %p86, %p87
      %p89 = scmp.ne.s32.totalorder %s81, %s83
      %p90 = scmp.eq.s32.totalorder %s31, 1
      %p91 = por %p89, %p90
      %p92 = scmp.ne.s32.totalorder %s83, %s84
      %p93 = scmp.eq.s32.totalorder %s31, 0
      %p94 = por %p92, %p93
      %p95 = scmp.ne.s32.totalorder %s83, %s84
      %p96 = scmp.eq.s32.totalorder %s32, 1
      %p97 = por %p95, %p96
      %p99 = scmp.ne.s32.totalorder %s84, %s98
      %p100 = scmp.eq.s32.totalorder %s32, 0
      %p101 = por %p99, %p100
      %s103 = sadd.s32 %s102, 1
      %p106 = scmp.eq.s32.totalorder %s26, 1
      %p107 = scmp.ne.s32.totalorder %s102, %s104
      %p108 = scmp.eq.s32.totalorder %s26, 0
      %p109 = por %p107, %p108
      %p110 = scmp.ne.s32.totalorder %s102, %s104
      %p111 = scmp.eq.s32.totalorder %s31, 1
      %p112 = por %p110, %p111
      %p113 = scmp.ne.s32.totalorder %s104, %s105
      %p114 = scmp.eq.s32.totalorder %s31, 0
      %p115 = por %p113, %p114
      %p116 = scmp.ne.s32.totalorder %s104, %s105
      %p117 = scmp.eq.s32.totalorder %s32, 1
      %p118 = por %p116, %p117
      %p120 = scmp.ne.s32.totalorder %s105, %s119
      %p121 = scmp.eq.s32.totalorder %s32, 0
      %p122 = por %p120, %p121
      %s124 = sadd.s32 %s123, 1
      %p127 = scmp.eq.s32.totalorder %s26, 1
      %p128 = scmp.ne.s32.totalorder %s123, %s125
      %p129 = scmp.eq.s32.totalorder %s26, 0
      %p130 = por %p128, %p129
      %p131 = scmp.ne.s32.totalorder %s123, %s125
      %p132 = scmp.eq.s32.totalorder %s31, 1
      %p133 = por %p131, %p132
      %p134 = scmp.ne.s32.totalorder %s125, %s126
      %p135 = scmp.eq.s32.totalorder %s31, 0
      %p136 = por %p134, %p135
      %p137 = scmp.ne.s32.totalorder %s125, %s126
      %p138 = scmp.eq.s32.totalorder %s32, 1
      %p139 = por %p137, %p138
      %p141 = scmp.ne.s32.totalorder %s126, %s140
      %p142 = scmp.eq.s32.totalorder %s32, 0
      %p143 = por %p141, %p142
      %s145 = sadd.s32 %s144, 1
      %p148 = scmp.eq.s32.totalorder %s26, 1
      %p149 = scmp.ne.s32.totalorder %s144, %s146
      %p150 = scmp.eq.s32.totalorder %s26, 0
      %p151 = por %p149, %p150
      %p152 = scmp.ne.s32.totalorder %s144, %s146
      %p153 = scmp.eq.s32.totalorder %s31, 1
      %p154 = por %p152, %p153
      %p155 = scmp.ne.s32.totalorder %s146, %s147
      %p156 = scmp.eq.s32.totalorder %s31, 0
      %p157 = por %p155, %p156
      %p158 = scmp.ne.s32.totalorder %s146, %s147
      %p159 = scmp.eq.s32.totalorder %s32, 1
      %p160 = por %p158, %p159
      %p162 = scmp.ne.s32.totalorder %s147, %s161
      %p163 = scmp.eq.s32.totalorder %s32, 0
      %p164 = por %p162, %p163
      %s166 = sadd.s32 %s165, 1
      %p169 = scmp.eq.s32.totalorder %s26, 1
      %p170 = scmp.ne.s32.totalorder %s165, %s167
      %p171 = scmp.eq.s32.totalorder %s26, 0
      %p172 = por %p170, %p171
      %p173 = scmp.ne.s32.totalorder %s165, %s167
      %p174 = scmp.eq.s32.totalorder %s31, 1
      %p175 = por %p173, %p174
      %p176 = scmp.ne.s32.totalorder %s167, %s168
      %p177 = scmp.eq.s32.totalorder %s31, 0
      %p178 = por %p176, %p177
      %p179 = scmp.ne.s32.totalorder %s167, %s168
      %p180 = scmp.eq.s32.totalorder %s32, 1
      %p181 = por %p179, %p180
      %p183 = scmp.ne.s32.totalorder %s168, %s182
      %p184 = scmp.eq.s32.totalorder %s32, 0
      %p185 = por %p183, %p184
      %s187 = sadd.s32 %s186, 1
      %p190 = scmp.eq.s32.totalorder %s26, 1
      %p191 = scmp.ne.s32.totalorder %s186, %s188
      %p192 = scmp.eq.s32.totalorder %s26, 0
      %p193 = por %p191, %p192
      %p194 = scmp.ne.s32.totalorder %s186, %s188
      %p195 = scmp.eq.s32.totalorder %s31, 1
      %p196 = por %p194, %p195
      %p197 = scmp.ne.s32.totalorder %s188, %s189
      %p198 = scmp.eq.s32.totalorder %s31, 0
      %p199 = por %p197, %p198
      %p200 = scmp.ne.s32.totalorder %s188, %s189
      %p201 = scmp.eq.s32.totalorder %s32, 1
      %p202 = por %p200, %p201
      %p204 = scmp.ne.s32.totalorder %s189, %s203
      %p205 = scmp.eq.s32.totalorder %s32, 0
      %p206 = por %p204, %p205
      %s208 = sadd.s32 %s207, 1
      %p211 = scmp.eq.s32.totalorder %s26, 1
      %p212 = scmp.ne.s32.totalorder %s207, %s209
      %p213 = scmp.eq.s32.totalorder %s26, 0
      %p214 = por %p212, %p213
      %p215 = scmp.ne.s32.totalorder %s207, %s209
      %p216 = scmp.eq.s32.totalorder %s31, 1
      %p217 = por %p215, %p216
      %p218 = scmp.ne.s32.totalorder %s209, %s210
      %p219 = scmp.eq.s32.totalorder %s31, 0
      %p220 = por %p218, %p219
      %p221 = scmp.ne.s32.totalorder %s209, %s210
      %p222 = scmp.eq.s32.totalorder %s32, 1
      %p223 = por %p221, %p222
      %p225 = scmp.ne.s32.totalorder %s210, %s224
      %p226 = scmp.eq.s32.totalorder %s32, 0
      %p227 = por %p225, %p226
      %s229 = sadd.s32 %s228, 1
      %p232 = scmp.eq.s32.totalorder %s26, 1
      %p233 = scmp.ne.s32.totalorder %s228, %s230
      %p234 = scmp.eq.s32.totalorder %s26, 0
      %p235 = por %p233, %p234
      %p236 = scmp.ne.s32.totalorder %s228, %s230
      %p237 = scmp.eq.s32.totalorder %s31, 1
      %p238 = por %p236, %p237
      %p239 = scmp.ne.s32.totalorder %s230, %s231
      %p240 = scmp.eq.s32.totalorder %s31, 0
      %p241 = por %p239, %p240
      %p242 = scmp.ne.s32.totalorder %s230, %s231
      %p243 = scmp.eq.s32.totalorder %s32, 1
      %p244 = por %p242, %p243
      %p246 = scmp.ne.s32.totalorder %s231, %s245
      %p247 = scmp.eq.s32.totalorder %s32, 0
      %p248 = por %p246, %p247
      %s250 = sadd.s32 %s249, 1
      %p253 = scmp.eq.s32.totalorder %s26, 1
      %p254 = scmp.ne.s32.totalorder %s249, %s251
      %p255 = scmp.eq.s32.totalorder %s26, 0
      %p256 = por %p254, %p255
      %p257 = scmp.ne.s32.totalorder %s249, %s251
      %p258 = scmp.eq.s32.totalorder %s31, 1
      %p259 = por %p257, %p258
      %p260 = scmp.ne.s32.totalorder %s251, %s252
      %p261 = scmp.eq.s32.totalorder %s31, 0
      %p262 = por %p260, %p261
      %p263 = scmp.ne.s32.totalorder %s251, %s252
      %p264 = scmp.eq.s32.totalorder %s32, 1
      %p265 = por %p263, %p264
      %p267 = scmp.ne.s32.totalorder %s252, %s266
      %p268 = scmp.eq.s32.totalorder %s32, 0
      %p269 = por %p267, %p268
      %s271 = sadd.s32 %s270, 1
      %p274 = scmp.eq.s32.totalorder %s26, 1
      %p275 = scmp.ne.s32.totalorder %s270, %s272
      %p276 = scmp.eq.s32.totalorder %s26, 0
      %p277 = por %p275, %p276
      %p278 = scmp.ne.s32.totalorder %s270, %s272
      %p279 = scmp.eq.s32.totalorder %s31, 1
      %p280 = por %p278, %p279
      %p281 = scmp.ne.s32.totalorder %s272, %s273
      %p282 = scmp.eq.s32.totalorder %s31, 0
      %p283 = por %p281, %p282
      %p284 = scmp.ne.s32.totalorder %s272, %s273
      %p285 = scmp.eq.s32.totalorder %s32, 1
      %p286 = por %p284, %p285
      %p288 = scmp.ne.s32.totalorder %s273, %s287
      %p289 = scmp.eq.s32.totalorder %s32, 0
      %p290 = por %p288, %p289
      %s291 = ssub.s32 %s26, %s33
      %p292 = scmp.eq.s32.totalorder %s291, 0
      %s294 = sadd.s32 %s293, 1
      %s295 = scalar_select %p292, %s293, %s294
      %p298 = pneg %p292
      %p299 = scmp.eq.s32.totalorder %s26, 1
      %p300 = por %p298, %p299
      %p301 = scmp.ne.s32.totalorder %s293, %s296
      %p302 = scmp.eq.s32.totalorder %s26, 0
      %p303 = por %p301, %p302
      %p304 = scmp.ne.s32.totalorder %s293, %s296
      %p305 = scmp.eq.s32.totalorder %s31, 1
      %p306 = por %p304, %p305
      %p307 = scmp.ne.s32.totalorder %s296, %s297
      %p308 = scmp.eq.s32.totalorder %s31, 0
      %p309 = por %p307, %p308
      %p310 = scmp.ne.s32.totalorder %s296, %s297
      %p311 = scmp.eq.s32.totalorder %s32, 1
      %p312 = por %p310, %p311
      %p314 = scmp.ne.s32.totalorder %s297, %s313
      %p315 = scmp.eq.s32.totalorder %s32, 0
      %p316 = por %p314, %p315
      %p317 = scmp.le.s32.totalorder 1, %s26
      %p318 = scmp.lt.s32.totalorder %s26, 3
      %p319 = pnand %p317, %p318
      %p320 = pneg %p319
      // Predicated region
      $region9: #{tpu_custom_call.1} parent=5 // pred_check
        _
      $region10: #{tpu_custom_call.1} parent=5 // pred_check_branch
        %322 = sbr.rel (%p319) target = $region12
      $region11: #{tpu_custom_call.1} parent=5 // pred_region
        %s323 = ssub.s32 %s26, 1
        // Predicated region
        $region13: #{tpu_custom_call.1} parent=11 // pred_check
          %p324 = pneg %p73
        $region14: #{tpu_custom_call.1} parent=11 // pred_check_branch
          %326 = sbr.rel (%p324) target = $region16
        $region15: #{tpu_custom_call.1} parent=11 // pred_region
          _
        $region16: #{tpu_custom_call.1} parent=11 // pred_fallthru
          _
        // Predicated region
        $region17: #{tpu_custom_call.1} parent=11 // pred_check
          %p327 = pneg %p94
        $region18: #{tpu_custom_call.1} parent=11 // pred_check_branch
          %329 = sbr.rel (%p327) target = $region20
        $region19: #{tpu_custom_call.1} parent=11 // pred_region
          _
        $region20: #{tpu_custom_call.1} parent=11 // pred_fallthru
          _
        // Predicated region
        $region21: #{tpu_custom_call.1} parent=11 // pred_check
          %p330 = pneg %p115
        $region22: #{tpu_custom_call.1} parent=11 // pred_check_branch
          %332 = sbr.rel (%p330) target = $region24
        $region23: #{tpu_custom_call.1} parent=11 // pred_region
          %s334 = ssub.s32 3072, 3072
          %335 = vsyncadd [#allocation6], %s334
          %s336 = sshll.u32 [#allocation5], 4
          %s337 = int_to_ptr.vmem [resolvable:$true] %s336
          %342 = dma.hbm_to_vmem [thread:$0]  %s3, 3072, %s337, [#allocation6], 192, 192, 12
        $region24: #{tpu_custom_call.1} parent=11 // pred_fallthru
          _
        // Predicated region
        $region25: #{tpu_custom_call.1} parent=11 // pred_check
          %p343 = pneg %p136
        $region26: #{tpu_custom_call.1} parent=11 // pred_check_branch
          %345 = sbr.rel (%p343) target = $region28
        $region27: #{tpu_custom_call.1} parent=11 // pred_region
          %s347 = ssub.s32 1024, 1024
          %348 = vsyncadd [#allocation6], %s347
          %s349 = sshll.u32 [#allocation7], 4
          %s350 = int_to_ptr.vmem [resolvable:$true] %s349
          %355 = dma.hbm_to_vmem [thread:$0]  %s4, 1024, %s350, [#allocation6], 64, 64, 4
        $region28: #{tpu_custom_call.1} parent=11 // pred_fallthru
          _
        // Predicated region
        $region29: #{tpu_custom_call.1} parent=11 // pred_check
          %p356 = pneg %p157
        $region30: #{tpu_custom_call.1} parent=11 // pred_check_branch
          %358 = sbr.rel (%p356) target = $region32
        $region31: #{tpu_custom_call.1} parent=11 // pred_region
          _
        $region32: #{tpu_custom_call.1} parent=11 // pred_fallthru
          _
        // Predicated region
        $region33: #{tpu_custom_call.1} parent=11 // pred_check
          %p359 = pneg %p178
        $region34: #{tpu_custom_call.1} parent=11 // pred_check_branch
          %361 = sbr.rel (%p359) target = $region36
        $region35: #{tpu_custom_call.1} parent=11 // pred_region
          _
        $region36: #{tpu_custom_call.1} parent=11 // pred_fallthru
          _
        // Predicated region
        $region37: #{tpu_custom_call.1} parent=11 // pred_check
          %p362 = pneg %p199
        $region38: #{tpu_custom_call.1} parent=11 // pred_check_branch
          %364 = sbr.rel (%p362) target = $region40
        $region39: #{tpu_custom_call.1} parent=11 // pred_region
          _
        $region40: #{tpu_custom_call.1} parent=11 // pred_fallthru
          _
        // Predicated region
        $region41: #{tpu_custom_call.1} parent=11 // pred_check
          %p365 = pneg %p220
        $region42: #{tpu_custom_call.1} parent=11 // pred_check_branch
          %367 = sbr.rel (%p365) target = $region44
        $region43: #{tpu_custom_call.1} parent=11 // pred_region
          %s369 = ssub.s32 2048, 2048
          %370 = vsyncadd [#allocation9], %s369
          %s371 = sshll.u32 [#allocation8], 4
          %s372 = int_to_ptr.vmem [resolvable:$true] %s371
          %377 = dma.hbm_to_vmem [thread:$0]  %s8, 2048, %s372, [#allocation9], 128, 128, 8
        $region44: #{tpu_custom_call.1} parent=11 // pred_fallthru
          _
        // Predicated region
        $region45: #{tpu_custom_call.1} parent=11 // pred_check
          %p378 = pneg %p241
        $region46: #{tpu_custom_call.1} parent=11 // pred_check_branch
          %380 = sbr.rel (%p378) target = $region48
        $region47: #{tpu_custom_call.1} parent=11 // pred_region
          _
        $region48: #{tpu_custom_call.1} parent=11 // pred_fallthru
          _
        // Predicated region
        $region49: #{tpu_custom_call.1} parent=11 // pred_check
          %p381 = pneg %p262
        $region50: #{tpu_custom_call.1} parent=11 // pred_check_branch
          %383 = sbr.rel (%p381) target = $region52
        $region51: #{tpu_custom_call.1} parent=11 // pred_region
          %s385 = ssub.s32 2048, 2048
          %386 = vsyncadd [#allocation9], %s385
          %s387 = sshll.u32 [#allocation10], 4
          %s388 = int_to_ptr.vmem [resolvable:$true] %s387
          %393 = dma.hbm_to_vmem [thread:$0]  %s10, 2048, %s388, [#allocation9], 64, 64, 4
        $region52: #{tpu_custom_call.1} parent=11 // pred_fallthru
          _
        // Predicated region
        $region53: #{tpu_custom_call.1} parent=11 // pred_check
          %p394 = pneg %p283
        $region54: #{tpu_custom_call.1} parent=11 // pred_check_branch
          %396 = sbr.rel (%p394) target = $region56
        $region55: #{tpu_custom_call.1} parent=11 // pred_region
          _
        $region56: #{tpu_custom_call.1} parent=11 // pred_fallthru
          _
      $region12: #{tpu_custom_call.1} parent=5 // pred_fallthru
        _
      %p397 = scmp.lt.s32.totalorder %s26, 2
      // Predicated region
      $region57: #{tpu_custom_call.1} parent=5 // pred_check
        %p398 = pneg %p397
      $region58: #{tpu_custom_call.1} parent=5 // pred_check_branch
        %400 = sbr.rel (%p398) target = $region60
      $region59: #{tpu_custom_call.1} parent=5 // pred_region
        // Predicated region
        $region61: #{tpu_custom_call.1} parent=59 // pred_check
          %p401 = pneg %p46
        $region62: #{tpu_custom_call.1} parent=59 // pred_check_branch
          %403 = sbr.rel (%p401) target = $region64
        $region63: #{tpu_custom_call.1} parent=59 // pred_region
          %s404 = sand.u32 %s36, 1
          %s405 = scalar_lea.sflag [#allocation3], %s404
          %s406 = sand.u32 %s36, 1
          %s407 = smul.addr %s406, 8
          %s408 = scalar_lea.vmem [#allocation2], %s407
          %s410 = ssub.s32 128, 128
          %411 = vsyncadd %s405, %s410
          %s412 = smul.addr %s26, 128
          %s413 = scalar_lea.hbm %s0, %s412
          %s415 = sshll.u32 %s408, 4
          %s416 = int_to_ptr.vmem [resolvable:$true] %s415
          %418 = dma.hbm_to_vmem [thread:$0]  %s413, 128, %s416, %s405
        $region64: #{tpu_custom_call.1} parent=59 // pred_fallthru
          _
      $region60: #{tpu_custom_call.1} parent=5 // pred_fallthru
        _
      %p419 = scmp.le.s32.totalorder 1, %s26
      %p420 = scmp.lt.s32.totalorder %s26, 3
      %p421 = pnand %p419, %p420
      %p422 = pneg %p421
      // Predicated region
      $region65: #{tpu_custom_call.1} parent=5 // pred_check
        _
      $region66: #{tpu_custom_call.1} parent=5 // pred_check_branch
        %424 = sbr.rel (%p421) target = $region68
      $region67: #{tpu_custom_call.1} parent=5 // pred_region
        %s425 = ssub.s32 %s26, 1
        %s426 = sand.u32 %s39, 1
        %s427 = scalar_lea.sflag [#allocation3], %s426
        %s428 = sand.u32 %s39, 1
        %s429 = smul.addr %s428, 8
        %s430 = scalar_lea.vmem [#allocation2], %s429
        // Predicated region
        $region69: #{tpu_custom_call.1} parent=67 // pred_check
          %p431 = pneg %p52
        $region70: #{tpu_custom_call.1} parent=67 // pred_check_branch
          %433 = sbr.rel (%p431) target = $region72
        $region71: #{tpu_custom_call.1} parent=67 // pred_region
          %434 = dma.done %s427, 128
        $region72: #{tpu_custom_call.1} parent=67 // pred_fallthru
          _
        // Predicated region
        $region73: #{tpu_custom_call.1} parent=67 // pred_check
          %p435 = pneg %p115
        $region74: #{tpu_custom_call.1} parent=67 // pred_check_branch
          %437 = sbr.rel (%p435) target = $region76
        $region75: #{tpu_custom_call.1} parent=67 // pred_region
          %438 = dma.done [#allocation6], 3072
        $region76: #{tpu_custom_call.1} parent=67 // pred_fallthru
          _
        // Predicated region
        $region77: #{tpu_custom_call.1} parent=67 // pred_check
          %p439 = pneg %p136
        $region78: #{tpu_custom_call.1} parent=67 // pred_check_branch
          %441 = sbr.rel (%p439) target = $region80
        $region79: #{tpu_custom_call.1} parent=67 // pred_region
          %442 = dma.done [#allocation6], 1024
        $region80: #{tpu_custom_call.1} parent=67 // pred_fallthru
          _
        // Predicated region
        $region81: #{tpu_custom_call.1} parent=67 // pred_check
          %p443 = pneg %p220
        $region82: #{tpu_custom_call.1} parent=67 // pred_check_branch
          %445 = sbr.rel (%p443) target = $region84
        $region83: #{tpu_custom_call.1} parent=67 // pred_region
          %446 = dma.done [#allocation9], 2048
        $region84: #{tpu_custom_call.1} parent=67 // pred_fallthru
          _
        // Predicated region
        $region85: #{tpu_custom_call.1} parent=67 // pred_check
          %p447 = pneg %p262
        $region86: #{tpu_custom_call.1} parent=67 // pred_check_branch
          %449 = sbr.rel (%p447) target = $region88
        $region87: #{tpu_custom_call.1} parent=67 // pred_region
          %450 = dma.done [#allocation9], 2048
        $region88: #{tpu_custom_call.1} parent=67 // pred_fallthru
          _
        %s451 = sand.u32 %s39, 1
        %s452 = scalar_lea.sflag [#allocation3], %s451
        %s453 = sand.u32 %s39, 1
        %s454 = smul.addr %s453, 8
        %s455 = scalar_lea.vmem [#allocation2], %s454
        %p456 = pneg %p52
        %p457 = pneg %p49
        %p458 = pneg %p73
        %p459 = pneg %p70
        %p460 = pneg %p94
        %p461 = pneg %p91
        %p462 = pneg %p115
        %p463 = pneg %p112
        %p464 = pneg %p136
        %p465 = pneg %p133
        %p466 = pneg %p157
        %p467 = pneg %p154
        %p468 = pneg %p178
        %p469 = pneg %p175
        %p470 = pneg %p199
        %p471 = pneg %p196
        %p472 = pneg %p220
        %p473 = pneg %p217
        %p474 = pneg %p241
        %p475 = pneg %p238
        %p476 = pneg %p262
        %p477 = pneg %p259
        %p478 = pneg %p283
        %p479 = pneg %p280
        %p480 = pneg %p309
        %p481 = pneg %p306
        %s482 = sand.u32 %s296, 1
        %s483 = scalar_lea.sflag [#allocation4], %s482
        %s484 = sand.u32 %s296, 1
        %s485 = smul.addr %s484, 8
        %s486 = scalar_lea.vmem [#allocation11], %s485
        %v488 = vld [vmem:[%s430] sm:$0xff]
        %489 = vadd.xlane.f32.xlu0 %v488
        %v490 = vpop.xlane.xlu0 %489
        %v491 = vrcp.pop 128.0
        %v492 = vmul.f32 %v490, %v491
        %v493 = vsub.f32 %v488, %v492
        %v494 = vmul.f32 %v493, %v493
        %495 = vadd.xlane.f32.xlu0 %v494
        %v496 = vpop.xlane.xlu0 %495
        %v497 = vmul.f32 %v496, %v491
        %v498 = vadd.f32 %v497, 1e-05
        %v499 = vrsqrt.pop %v498
        %v500 = vmul.f32 %v493, %v499
        %v501 = vld [vmem:[%s1] sm:$0x1]
        %v503 = vlaneseq
        %v504 = vshrl.u32 %v503, 7
        %v505 = vsub.s32 0, %v504
        %v506 = vrot.slane %v501, %v505
        %v508 = vmul.f32 %v500, %v506
        %v509 = vld [vmem:[%s2] sm:$0x1]
        %v511 = vlaneseq
        %v512 = vshrl.u32 %v511, 7
        %v513 = vsub.s32 0, %v512
        %v514 = vrot.slane %v509, %v513
        %v516 = vadd.f32 %v508, %v514
        %v517 = vpack.c.bf16 %v516, %v516
        %v518 = vld [vmem:[#allocation5] sm:$0xff]
        %v519 = vld [vmem:[#allocation5 + $0x8] sm:$0xf]
        %v520 = vld [vmem:[#allocation5 + $0xc] sm:$0xff]
        %v521 = vld [vmem:[#allocation5 + $0x14] sm:$0xf]
        %v522 = vld [vmem:[#allocation5 + $0x18] sm:$0xff]
        %v523 = vld [vmem:[#allocation5 + $0x20] sm:$0xf]
        %v524 = vld [vmem:[#allocation5 + $0x24] sm:$0xff]
        %v525 = vld [vmem:[#allocation5 + $0x2c] sm:$0xf]
        %v526 = vld [vmem:[#allocation5 + $0x30] sm:$0xff]
        %v527 = vld [vmem:[#allocation5 + $0x38] sm:$0xf]
        %v528 = vld [vmem:[#allocation5 + $0x3c] sm:$0xff]
        %v529 = vld [vmem:[#allocation5 + $0x44] sm:$0xf]
        %v530 = vld [vmem:[#allocation5 + $0x48] sm:$0xff]
        %v531 = vld [vmem:[#allocation5 + $0x50] sm:$0xf]
        %v532 = vld [vmem:[#allocation5 + $0x54] sm:$0xff]
        %v533 = vld [vmem:[#allocation5 + $0x5c] sm:$0xf]
        %v534 = vld [vmem:[#allocation5 + $0x60] sm:$0xff]
        %v535 = vld [vmem:[#allocation5 + $0x68] sm:$0xf]
        %v536 = vld [vmem:[#allocation5 + $0x6c] sm:$0xff]
        %v537 = vld [vmem:[#allocation5 + $0x74] sm:$0xf]
        %v538 = vld [vmem:[#allocation5 + $0x78] sm:$0xff]
        %v539 = vld [vmem:[#allocation5 + $0x80] sm:$0xf]
        %v540 = vld [vmem:[#allocation5 + $0x84] sm:$0xff]
        %v541 = vld [vmem:[#allocation5 + $0x8c] sm:$0xf]
        %v542 = vld [vmem:[#allocation5 + $0x90] sm:$0xff]
        %v543 = vld [vmem:[#allocation5 + $0x98] sm:$0xf]
        %v544 = vld [vmem:[#allocation5 + $0x9c] sm:$0xff]
        %v545 = vld [vmem:[#allocation5 + $0xa4] sm:$0xf]
        %v546 = vld [vmem:[#allocation5 + $0xa8] sm:$0xff]
        %v547 = vld [vmem:[#allocation5 + $0xb0] sm:$0xf]
        %v548 = vld [vmem:[#allocation5 + $0xb4] sm:$0xff]
        %v549 = vld [vmem:[#allocation5 + $0xbc] sm:$0xf]
        %v582 = vunpack.c.l.b16 %v518
        %v583 = vunpack.c.h.b16 %v518
        %v584 = vunpack.c.l.b16 %v519
        %v585 = vunpack.c.l.b16 %v520
        %v586 = vunpack.c.h.b16 %v520
        %v587 = vunpack.c.l.b16 %v521
        %v588 = vunpack.c.l.b16 %v522
        %v589 = vunpack.c.h.b16 %v522
        %v590 = vunpack.c.l.b16 %v523
        %v591 = vunpack.c.l.b16 %v524
        %v592 = vunpack.c.h.b16 %v524
        %v593 = vunpack.c.l.b16 %v525
        %v594 = vunpack.c.l.b16 %v526
        %v595 = vunpack.c.h.b16 %v526
        %v596 = vunpack.c.l.b16 %v527
        %v597 = vunpack.c.l.b16 %v528
        %v598 = vunpack.c.h.b16 %v528
        %v599 = vunpack.c.l.b16 %v529
        %v600 = vunpack.c.l.b16 %v530
        %v601 = vunpack.c.h.b16 %v530
        %v602 = vunpack.c.l.b16 %v531
        %v603 = vunpack.c.l.b16 %v532
        %v604 = vunpack.c.h.b16 %v532
        %v605 = vunpack.c.l.b16 %v533
        %v606 = vunpack.c.l.b16 %v534
        %v607 = vunpack.c.h.b16 %v534
        %v608 = vunpack.c.l.b16 %v535
        %v609 = vunpack.c.l.b16 %v536
        %v610 = vunpack.c.h.b16 %v536
        %v611 = vunpack.c.l.b16 %v537
        %v612 = vunpack.c.l.b16 %v538
        %v613 = vunpack.c.h.b16 %v538
        %v614 = vunpack.c.l.b16 %v539
        %v615 = vunpack.c.l.b16 %v540
        %v616 = vunpack.c.h.b16 %v540
        %v617 = vunpack.c.l.b16 %v541
        %v618 = vunpack.c.l.b16 %v542
        %v619 = vunpack.c.h.b16 %v542
        %v620 = vunpack.c.l.b16 %v543
        %v621 = vunpack.c.l.b16 %v544
        %v622 = vunpack.c.h.b16 %v544
        %v623 = vunpack.c.l.b16 %v545
        %v624 = vunpack.c.l.b16 %v546
        %v625 = vunpack.c.h.b16 %v546
        %v626 = vunpack.c.l.b16 %v547
        %v627 = vunpack.c.l.b16 %v548
        %v628 = vunpack.c.h.b16 %v548
        %v629 = vunpack.c.l.b16 %v549
        %v630 = vpack.c.b16 %v585, %v582
        %v631 = vpack.c.b16 %v586, %v583
        %v632 = vpack.c.b16 %v587, %v584
        %v633 = vpack.c.b16 %v591, %v588
        %v634 = vpack.c.b16 %v592, %v589
        %v635 = vpack.c.b16 %v593, %v590
        %v636 = vpack.c.b16 %v597, %v594
        %v637 = vpack.c.b16 %v598, %v595
        %v638 = vpack.c.b16 %v599, %v596
        %v639 = vpack.c.b16 %v603, %v600
        %v640 = vpack.c.b16 %v604, %v601
        %v641 = vpack.c.b16 %v605, %v602
        %v642 = vpack.c.b16 %v609, %v606
        %v643 = vpack.c.b16 %v610, %v607
        %v644 = vpack.c.b16 %v611, %v608
        %v645 = vpack.c.b16 %v615, %v612
        %v646 = vpack.c.b16 %v616, %v613
        %v647 = vpack.c.b16 %v617, %v614
        %v648 = vpack.c.b16 %v621, %v618
        %v649 = vpack.c.b16 %v622, %v619
        %v650 = vpack.c.b16 %v623, %v620
        %v651 = vpack.c.b16 %v627, %v624
        %v652 = vpack.c.b16 %v628, %v625
        %v653 = vpack.c.b16 %v629, %v626
        %678 = vmatprep.subr.bf16.mxu0 %v652
        %679 = vmatpush1.bf16.msra.mxu0 %v651
        %680 = vmatprep.subr.bf16.mxu0 %v649
        %681 = vmatpush1.bf16.msra.mxu0 %v648
        %682 = vmatprep.subr.bf16.mxu0 %v646
        %683 = vmatpush1.bf16.msra.mxu0 %v645
        %684 = vmatprep.subr.bf16.mxu0 %v643
        %685 = vmatpush1.bf16.msra.mxu0 %v642
        %686 = vmatprep.subr.bf16.mxu0 %v640
        %687 = vmatpush1.bf16.msra.mxu0 %v639
        %688 = vmatprep.subr.bf16.mxu0 %v637
        %689 = vmatpush1.bf16.msra.mxu0 %v636
        %690 = vmatprep.subr.bf16.mxu0 %v634
        %691 = vmatpush1.bf16.msra.mxu0 %v633
        %692 = vmatprep.subr.bf16.mxu0 %v631
        %693 = vmatpush1.bf16.msra.mxu0 %v630
        %694 = vmatprep.subr.bf16.mxu0 0
        %695 = vmatpush2.bf16.msra.mxu0 0
        %696 = vmatprep.subr.bf16.mxu0 0
        %697 = vmatpush2.bf16.msra.mxu0 0
        %698 = vmatprep.subr.bf16.mxu0 0
        %699 = vmatpush2.bf16.msra.mxu0 0
        %700 = vmatprep.subr.bf16.mxu0 0
        %701 = vmatpush2.bf16.msra.mxu0 0
        %702 = vmatprep.subr.bf16.mxu0 0
        %703 = vmatpush2.bf16.msra.mxu0 0
        %704 = vmatprep.subr.bf16.mxu0 0
        %705 = vmatpush2.bf16.msra.mxu0 0
        %706 = vmatprep.subr.bf16.mxu0 0
        %707 = vmatpush2.bf16.msra.mxu0 0
        %708 = vmatprep.subr.bf16.mxu0 0
        %709 = vmatpush2.bf16.msra.mxu0 0
        %710 = vmatprep.mubr.bf16.mxu0 0
        %711 = vmatmul.mubr.bf16.gmra.mxu0 %v517
        %v712 = vpop.f32.mrf.mxu0
        %v713 = vadd.f32 0.0, %v712
        %v714 = vpop.f32.mrf.mxu0
        %v715 = vadd.f32 0.0, %v714
        %v716 = vpop.f32.mrf.mxu0
        %v717 = vpop.f32.mrf.mxu0
        %718 = vdwg.mxu0
        %719 = vmatprep.subr.bf16.mxu0 0
        %720 = vmatpush1.bf16.msra.mxu0 %v653
        %721 = vmatprep.subr.bf16.mxu0 0
        %722 = vmatpush1.bf16.msra.mxu0 %v650
        %723 = vmatprep.subr.bf16.mxu0 0
        %724 = vmatpush1.bf16.msra.mxu0 %v647
        %725 = vmatprep.subr.bf16.mxu0 0
        %726 = vmatpush1.bf16.msra.mxu0 %v644
        %727 = vmatprep.subr.bf16.mxu0 0
        %728 = vmatpush1.bf16.msra.mxu0 %v641
        %729 = vmatprep.subr.bf16.mxu0 0
        %730 = vmatpush1.bf16.msra.mxu0 %v638
        %731 = vmatprep.subr.bf16.mxu0 0
        %732 = vmatpush1.bf16.msra.mxu0 %v635
        %733 = vmatprep.subr.bf16.mxu0 0
        %734 = vmatpush1.bf16.msra.mxu0 %v632
        %735 = vmatprep.subr.bf16.mxu0 0
        %736 = vmatpush2.bf16.msra.mxu0 0
        %737 = vmatprep.subr.bf16.mxu0 0
        %738 = vmatpush2.bf16.msra.mxu0 0
        %739 = vmatprep.subr.bf16.mxu0 0
        %740 = vmatpush2.bf16.msra.mxu0 0
        %741 = vmatprep.subr.bf16.mxu0 0
        %742 = vmatpush2.bf16.msra.mxu0 0
        %743 = vmatprep.subr.bf16.mxu0 0
        %744 = vmatpush2.bf16.msra.mxu0 0
        %745 = vmatprep.subr.bf16.mxu0 0
        %746 = vmatpush2.bf16.msra.mxu0 0
        %747 = vmatprep.subr.bf16.mxu0 0
        %748 = vmatpush2.bf16.msra.mxu0 0
        %749 = vmatprep.subr.bf16.mxu0 0
        %750 = vmatpush2.bf16.msra.mxu0 0
        %751 = vmatprep.mubr.bf16.mxu0 0
        %752 = vmatmul.mubr.bf16.gmra.mxu0 %v517
        %v753 = vpop.f32.mrf.mxu0
        %v754 = vadd.f32 0.0, %v753
        %v755 = vpop.f32.mrf.mxu0
        %v756 = vpop.f32.mrf.mxu0
        %v757 = vpop.f32.mrf.mxu0
        %758 = vdwg.mxu0
        %v759 = vlaneseq
        %v760 = vshrl.u32 %v759, 7
        %v761 = vlaneseq
        %v762 = vand.u32 %v761, 127
        %vm763 = vcmp.le.s32.totalorder %v762, %v760
        %v764 = vld [vmem:[#allocation7] sm:$0xf]
        %v765 = vld [vmem:[#allocation7 + $0x4] sm:$0xf]
        %v766 = vld [vmem:[#allocation7 + $0x8] sm:$0xf]
        %v767 = vld [vmem:[#allocation7 + $0xc] sm:$0xf]
        %v768 = vld [vmem:[#allocation7 + $0x10] sm:$0xf]
        %v769 = vld [vmem:[#allocation7 + $0x14] sm:$0xf]
        %v770 = vld [vmem:[#allocation7 + $0x18] sm:$0xf]
        %v771 = vld [vmem:[#allocation7 + $0x1c] sm:$0xf]
        %v772 = vld [vmem:[#allocation7 + $0x20] sm:$0xf]
        %v773 = vld [vmem:[#allocation7 + $0x24] sm:$0xf]
        %v774 = vld [vmem:[#allocation7 + $0x28] sm:$0xf]
        %v775 = vld [vmem:[#allocation7 + $0x2c] sm:$0xf]
        %v776 = vld [vmem:[#allocation7 + $0x30] sm:$0xf]
        %v777 = vld [vmem:[#allocation7 + $0x34] sm:$0xf]
        %v778 = vld [vmem:[#allocation7 + $0x38] sm:$0xf]
        %v779 = vld [vmem:[#allocation7 + $0x3c] sm:$0xf]
        %v780 = vpack.c.bf16 %v713, %v713
        %v781 = vpack.c.bf16 %v715, %v715
        %v782 = vpack.c.bf16 %v754, %v754
        %vm783 = vcmask 261120
        %v785 = vsel %vm783, %v780, 0
        %v788 = vsel %vm783, %v781, 0
        %790 = vmatprep.subr.bf16.mxu0 0
        %791 = vmatpush1.bf16.xpose.msra.mxu0 0
        %792 = vmatprep.subr.bf16.mxu0 0
        %793 = vmatpush1.bf16.xpose.msra.mxu0 0
        %794 = vmatprep.subr.bf16.mxu0 0
        %795 = vmatpush1.bf16.xpose.msra.mxu0 0
        %796 = vmatprep.subr.bf16.mxu0 0
        %797 = vmatpush1.bf16.xpose.msra.mxu0 0
        %798 = vmatprep.subr.bf16.mxu0 0
        %799 = vmatpush1.bf16.xpose.msra.mxu0 0
        %800 = vmatprep.subr.bf16.mxu0 0
        %801 = vmatpush1.bf16.xpose.msra.mxu0 0
        %802 = vmatprep.subr.bf16.mxu0 0
        %803 = vmatpush1.bf16.xpose.msra.mxu0 0
        %804 = vmatprep.subr.bf16.mxu0 0
        %805 = vmatpush1.bf16.xpose.msra.mxu0 %v788
        %806 = vmatprep.subr.bf16.mxu0 0
        %807 = vmatpush2.bf16.xpose.msra.mxu0 0
        %808 = vmatprep.subr.bf16.mxu0 0
        %809 = vmatpush2.bf16.xpose.msra.mxu0 0
        %810 = vmatprep.subr.bf16.mxu0 0
        %811 = vmatpush2.bf16.xpose.msra.mxu0 0
        %812 = vmatprep.subr.bf16.mxu0 0
        %813 = vmatpush2.bf16.xpose.msra.mxu0 0
        %814 = vmatprep.subr.bf16.mxu0 0
        %815 = vmatpush2.bf16.xpose.msra.mxu0 0
        %816 = vmatprep.subr.bf16.mxu0 0
        %817 = vmatpush2.bf16.xpose.msra.mxu0 0
        %818 = vmatprep.subr.bf16.mxu0 0
        %819 = vmatpush2.bf16.xpose.msra.mxu0 0
        %820 = vmatprep.subr.bf16.mxu0 0
        %821 = vmatpush2.bf16.xpose.msra.mxu0 0
        %822 = vmatprep.mubr.bf16.mxu0 0
        %823 = vmatmul.mubr.bf16.gmra.mxu0 %v785
        %v824 = vpop.f32.mrf.mxu0
        %v825 = vadd.f32 0.0, %v824
        %v826 = vpop.f32.mrf.mxu0
        %v827 = vpop.f32.mrf.mxu0
        %v828 = vpop.f32.mrf.mxu0
        %829 = vdwg.mxu0
        %v830 = vmul.f32 %v825, 0.17677669
        %v831 = vsel %vm763, %v830, -inf
        %vm832 = vcmask 64512
        %v833 = vsel %vm832, %v831, -inf
        %834 = vmax.xlane.f32.xlu0 %v833
        %v835 = vpop.xlane.xlu0 %834
        %v836 = vsub.f32 %v831, %v835
        %v837 = vmul.f32 %v836, 1.442695
        %v838 = vpow.pop %v837
        %v839 = vsel %vm832, %v838, 0.0
        %840 = vadd.xlane.f32.xlu0 %v839
        %v841 = vpop.xlane.xlu0 %840
        %v842 = vrcp.pop %v841
        %v843 = vmul.f32 %v838, %v842
        %v844 = vpack.c.bf16 %v843, %v843
        %v846 = vsel %vm832, %v844, 0
        %vm848 = vcmask 1043456
        %v850 = vsel %vm848, %v782, 0
        %852 = vmatprep.subr.bf16.mxu0 0
        %853 = vmatpush1.bf16.msra.mxu0 0
        %854 = vmatprep.subr.bf16.mxu0 0
        %855 = vmatpush1.bf16.msra.mxu0 0
        %856 = vmatprep.subr.bf16.mxu0 0
        %857 = vmatpush1.bf16.msra.mxu0 0
        %858 = vmatprep.subr.bf16.mxu0 0
        %859 = vmatpush1.bf16.msra.mxu0 0
        %860 = vmatprep.subr.bf16.mxu0 0
        %861 = vmatpush1.bf16.msra.mxu0 0
        %862 = vmatprep.subr.bf16.mxu0 0
        %863 = vmatpush1.bf16.msra.mxu0 0
        %864 = vmatprep.subr.bf16.mxu0 0
        %865 = vmatpush1.bf16.msra.mxu0 0
        %866 = vmatprep.subr.bf16.mxu0 0
        %867 = vmatpush1.bf16.msra.mxu0 %v850
        %868 = vmatprep.subr.bf16.mxu0 0
        %869 = vmatpush2.bf16.msra.mxu0 0
        %870 = vmatprep.subr.bf16.mxu0 0
        %871 = vmatpush2.bf16.msra.mxu0 0
        %872 = vmatprep.subr.bf16.mxu0 0
        %873 = vmatpush2.bf16.msra.mxu0 0
        %874 = vmatprep.subr.bf16.mxu0 0
        %875 = vmatpush2.bf16.msra.mxu0 0
        %876 = vmatprep.subr.bf16.mxu0 0
        %877 = vmatpush2.bf16.msra.mxu0 0
        %878 = vmatprep.subr.bf16.mxu0 0
        %879 = vmatpush2.bf16.msra.mxu0 0
        %880 = vmatprep.subr.bf16.mxu0 0
        %881 = vmatpush2.bf16.msra.mxu0 0
        %882 = vmatprep.subr.bf16.mxu0 0
        %883 = vmatpush2.bf16.msra.mxu0 0
        %884 = vmatprep.mubr.bf16.mxu0 0
        %885 = vmatmul.mubr.bf16.gmra.mxu0 %v846
        %v886 = vpop.f32.mrf.mxu0
        %v887 = vadd.f32 0.0, %v886
        %v888 = vpop.f32.mrf.mxu0
        %v889 = vpop.f32.mrf.mxu0
        %v890 = vpop.f32.mrf.mxu0
        %891 = vdwg.mxu0
        %v892 = vpack.c.bf16 %v887, %v887
        %894 = vrot.lane.b32.xlu0 %v780, 96
        %v895 = vpop.permute.xlu0 %894
        %897 = vrot.lane.b32.xlu0 %v781, 96
        %v898 = vpop.permute.xlu0 %897
        %v900 = vsel %vm783, %v895, 0
        %v903 = vsel %vm783, %v898, 0
        %905 = vmatprep.subr.bf16.mxu0 0
        %906 = vmatpush1.bf16.xpose.msra.mxu0 0
        %907 = vmatprep.subr.bf16.mxu0 0
        %908 = vmatpush1.bf16.xpose.msra.mxu0 0
        %909 = vmatprep.subr.bf16.mxu0 0
        %910 = vmatpush1.bf16.xpose.msra.mxu0 0
        %911 = vmatprep.subr.bf16.mxu0 0
        %912 = vmatpush1.bf16.xpose.msra.mxu0 0
        %913 = vmatprep.subr.bf16.mxu0 0
        %914 = vmatpush1.bf16.xpose.msra.mxu0 0
        %915 = vmatprep.subr.bf16.mxu0 0
        %916 = vmatpush1.bf16.xpose.msra.mxu0 0
        %917 = vmatprep.subr.bf16.mxu0 0
        %918 = vmatpush1.bf16.xpose.msra.mxu0 0
        %919 = vmatprep.subr.bf16.mxu0 0
        %920 = vmatpush1.bf16.xpose.msra.mxu0 %v903
        %921 = vmatprep.subr.bf16.mxu0 0
        %922 = vmatpush2.bf16.xpose.msra.mxu0 0
        %923 = vmatprep.subr.bf16.mxu0 0
        %924 = vmatpush2.bf16.xpose.msra.mxu0 0
        %925 = vmatprep.subr.bf16.mxu0 0
        %926 = vmatpush2.bf16.xpose.msra.mxu0 0
        %927 = vmatprep.subr.bf16.mxu0 0
        %928 = vmatpush2.bf16.xpose.msra.mxu0 0
        %929 = vmatprep.subr.bf16.mxu0 0
        %930 = vmatpush2.bf16.xpose.msra.mxu0 0
        %931 = vmatprep.subr.bf16.mxu0 0
        %932 = vmatpush2.bf16.xpose.msra.mxu0 0
        %933 = vmatprep.subr.bf16.mxu0 0
        %934 = vmatpush2.bf16.xpose.msra.mxu0 0
        %935 = vmatprep.subr.bf16.mxu0 0
        %936 = vmatpush2.bf16.xpose.msra.mxu0 0
        %937 = vmatprep.mubr.bf16.mxu0 0
        %938 = vmatmul.mubr.bf16.gmra.mxu0 %v900
        %v939 = vpop.f32.mrf.mxu0
        %v940 = vadd.f32 0.0, %v939
        %v941 = vpop.f32.mrf.mxu0
        %v942 = vpop.f32.mrf.mxu0
        %v943 = vpop.f32.mrf.mxu0
        %944 = vdwg.mxu0
        %v945 = vmul.f32 %v940, 0.17677669
        %v946 = vsel %vm763, %v945, -inf
        %v947 = vsel %vm832, %v946, -inf
        %948 = vmax.xlane.f32.xlu0 %v947
        %v949 = vpop.xlane.xlu0 %948
        %v950 = vsub.f32 %v946, %v949
        %v951 = vmul.f32 %v950, 1.442695
        %v952 = vpow.pop %v951
        %v953 = vsel %vm832, %v952, 0.0
        %954 = vadd.xlane.f32.xlu0 %v953
        %v955 = vpop.xlane.xlu0 %954
        %v956 = vrcp.pop %v955
        %v957 = vmul.f32 %v952, %v956
        %v958 = vpack.c.bf16 %v957, %v957
        %960 = vrot.lane.b32.xlu0 %v782, 96
        %v961 = vpop.permute.xlu0 %960
        %v963 = vsel %vm832, %v958, 0
        %v966 = vsel %vm848, %v961, 0
        %968 = vmatprep.subr.bf16.mxu0 0
        %969 = vmatpush1.bf16.msra.mxu0 0
        %970 = vmatprep.subr.bf16.mxu0 0
        %971 = vmatpush1.bf16.msra.mxu0 0
        %972 = vmatprep.subr.bf16.mxu0 0
        %973 = vmatpush1.bf16.msra.mxu0 0
        %974 = vmatprep.subr.bf16.mxu0 0
        %975 = vmatpush1.bf16.msra.mxu0 0
        %976 = vmatprep.subr.bf16.mxu0 0
        %977 = vmatpush1.bf16.msra.mxu0 0
        %978 = vmatprep.subr.bf16.mxu0 0
        %979 = vmatpush1.bf16.msra.mxu0 0
        %980 = vmatprep.subr.bf16.mxu0 0
        %981 = vmatpush1.bf16.msra.mxu0 0
        %982 = vmatprep.subr.bf16.mxu0 0
        %983 = vmatpush1.bf16.msra.mxu0 %v966
        %984 = vmatprep.subr.bf16.mxu0 0
        %985 = vmatpush2.bf16.msra.mxu0 0
        %986 = vmatprep.subr.bf16.mxu0 0
        %987 = vmatpush2.bf16.msra.mxu0 0
        %988 = vmatprep.subr.bf16.mxu0 0
        %989 = vmatpush2.bf16.msra.mxu0 0
        %990 = vmatprep.subr.bf16.mxu0 0
        %991 = vmatpush2.bf16.msra.mxu0 0
        %992 = vmatprep.subr.bf16.mxu0 0
        %993 = vmatpush2.bf16.msra.mxu0 0
        %994 = vmatprep.subr.bf16.mxu0 0
        %995 = vmatpush2.bf16.msra.mxu0 0
        %996 = vmatprep.subr.bf16.mxu0 0
        %997 = vmatpush2.bf16.msra.mxu0 0
        %998 = vmatprep.subr.bf16.mxu0 0
        %999 = vmatpush2.bf16.msra.mxu0 0
        %1000 = vmatprep.mubr.bf16.mxu0 0
        %1001 = vmatmul.mubr.bf16.gmra.mxu0 %v963
        %v1002 = vpop.f32.mrf.mxu0
        %v1003 = vadd.f32 0.0, %v1002
        %v1004 = vpop.f32.mrf.mxu0
        %v1005 = vpop.f32.mrf.mxu0
        %v1006 = vpop.f32.mrf.mxu0
        %1007 = vdwg.mxu0
        %v1008 = vpack.c.bf16 %v1003, %v1003
        %v1013 = vunpack.c.l.b16 %v768
        %v1014 = vunpack.c.l.b16 %v769
        %v1015 = vunpack.c.l.b16 %v770
        %v1016 = vunpack.c.l.b16 %v771
        %v1017 = vpack.c.b16 %v1014, %v1013
        %v1018 = vpack.c.b16 %v1016, %v1015
        %v1022 = vsel %vm783, %v1008, 0
        %1024 = vmatprep.subr.bf16.mxu0 0
        %1025 = vmatpush1.bf16.msra.mxu0 0
        %1026 = vmatprep.subr.bf16.mxu0 0
        %1027 = vmatpush1.bf16.msra.mxu0 0
        %1028 = vmatprep.subr.bf16.mxu0 0
        %1029 = vmatpush1.bf16.msra.mxu0 0
        %1030 = vmatprep.subr.bf16.mxu0 0
        %1031 = vmatpush1.bf16.msra.mxu0 0
        %1032 = vmatprep.subr.bf16.mxu0 0
        %1033 = vmatpush1.bf16.msra.mxu0 0
        %1034 = vmatprep.subr.bf16.mxu0 0
        %1035 = vmatpush1.bf16.msra.mxu0 0
        %1036 = vmatprep.subr.bf16.mxu0 0
        %1037 = vmatpush1.bf16.msra.mxu0 %v1018
        %1038 = vmatprep.subr.bf16.mxu0 0
        %1039 = vmatpush1.bf16.msra.mxu0 %v1017
        %1040 = vmatprep.subr.bf16.mxu0 0
        %1041 = vmatpush2.bf16.msra.mxu0 0
        %1042 = vmatprep.subr.bf16.mxu0 0
        %1043 = vmatpush2.bf16.msra.mxu0 0
        %1044 = vmatprep.subr.bf16.mxu0 0
        %1045 = vmatpush2.bf16.msra.mxu0 0
        %1046 = vmatprep.subr.bf16.mxu0 0
        %1047 = vmatpush2.bf16.msra.mxu0 0
        %1048 = vmatprep.subr.bf16.mxu0 0
        %1049 = vmatpush2.bf16.msra.mxu0 0
        %1050 = vmatprep.subr.bf16.mxu0 0
        %1051 = vmatpush2.bf16.msra.mxu0 0
        %1052 = vmatprep.subr.bf16.mxu0 0
        %1053 = vmatpush2.bf16.msra.mxu0 0
        %1054 = vmatprep.subr.bf16.mxu0 0
        %1055 = vmatpush2.bf16.msra.mxu0 0
        %1056 = vmatprep.mubr.bf16.mxu0 0
        %1057 = vmatmul.mubr.bf16.gmra.mxu0 %v1022
        %v1058 = vpop.f32.mrf.mxu0
        %v1059 = vadd.f32 0.0, %v1058
        %v1060 = vpop.f32.mrf.mxu0
        %v1061 = vpop.f32.mrf.mxu0
        %v1062 = vpop.f32.mrf.mxu0
        %1063 = vdwg.mxu0
        %1064 = vrot.lane.b32.xlu0 %v780, 64
        %v1065 = vpop.permute.xlu0 %1064
        %1066 = vrot.lane.b32.xlu0 %v781, 64
        %v1067 = vpop.permute.xlu0 %1066
        %v1069 = vsel %vm783, %v1065, 0
        %v1072 = vsel %vm783, %v1067, 0
        %1074 = vmatprep.subr.bf16.mxu0 0
        %1075 = vmatpush1.bf16.xpose.msra.mxu0 0
        %1076 = vmatprep.subr.bf16.mxu0 0
        %1077 = vmatpush1.bf16.xpose.msra.mxu0 0
        %1078 = vmatprep.subr.bf16.mxu0 0
        %1079 = vmatpush1.bf16.xpose.msra.mxu0 0
        %1080 = vmatprep.subr.bf16.mxu0 0
        %1081 = vmatpush1.bf16.xpose.msra.mxu0 0
        %1082 = vmatprep.subr.bf16.mxu0 0
        %1083 = vmatpush1.bf16.xpose.msra.mxu0 0
        %1084 = vmatprep.subr.bf16.mxu0 0
        %1085 = vmatpush1.bf16.xpose.msra.mxu0 0
        %1086 = vmatprep.subr.bf16.mxu0 0
        %1087 = vmatpush1.bf16.xpose.msra.mxu0 0
        %1088 = vmatprep.subr.bf16.mxu0 0
        %1089 = vmatpush1.bf16.xpose.msra.mxu0 %v1072
        %1090 = vmatprep.subr.bf16.mxu0 0
        %1091 = vmatpush2.bf16.xpose.msra.mxu0 0
        %1092 = vmatprep.subr.bf16.mxu0 0
        %1093 = vmatpush2.bf16.xpose.msra.mxu0 0
        %1094 = vmatprep.subr.bf16.mxu0 0
        %1095 = vmatpush2.bf16.xpose.msra.mxu0 0
        %1096 = vmatprep.subr.bf16.mxu0 0
        %1097 = vmatpush2.bf16.xpose.msra.mxu0 0
        %1098 = vmatprep.subr.bf16.mxu0 0
        %1099 = vmatpush2.bf16.xpose.msra.mxu0 0
        %1100 = vmatprep.subr.bf16.mxu0 0
        %1101 = vmatpush2.bf16.xpose.msra.mxu0 0
        %1102 = vmatprep.subr.bf16.mxu0 0
        %1103 = vmatpush2.bf16.xpose.msra.mxu0 0
        %1104 = vmatprep.subr.bf16.mxu0 0
        %1105 = vmatpush2.bf16.xpose.msra.mxu0 0
        %1106 = vmatprep.mubr.bf16.mxu0 0
        %1107 = vmatmul.mubr.bf16.gmra.mxu0 %v1069
        %v1108 = vpop.f32.mrf.mxu0
        %v1109 = vadd.f32 0.0, %v1108
        %v1110 = vpop.f32.mrf.mxu0
        %v1111 = vpop.f32.mrf.mxu0
        %v1112 = vpop.f32.mrf.mxu0
        %1113 = vdwg.mxu0
        %v1114 = vmul.f32 %v1109, 0.17677669
        %v1115 = vsel %vm763, %v1114, -inf
        %v1116 = vsel %vm832, %v1115, -inf
        %1117 = vmax.xlane.f32.xlu0 %v1116
        %v1118 = vpop.xlane.xlu0 %1117
        %v1119 = vsub.f32 %v1115, %v1118
        %v1120 = vmul.f32 %v1119, 1.442695
        %v1121 = vpow.pop %v1120
        %v1122 = vsel %vm832, %v1121, 0.0
        %1123 = vadd.xlane.f32.xlu0 %v1122
        %v1124 = vpop.xlane.xlu0 %1123
        %v1125 = vrcp.pop %v1124
        %v1126 = vmul.f32 %v1121, %v1125
        %v1127 = vpack.c.bf16 %v1126, %v1126
        %1128 = vrot.lane.b32.xlu0 %v782, 64
        %v1129 = vpop.permute.xlu0 %1128
        %v1131 = vsel %vm832, %v1127, 0
        %v1134 = vsel %vm848, %v1129, 0
        %1136 = vmatprep.subr.bf16.mxu0 0
        %1137 = vmatpush1.bf16.msra.mxu0 0
        %1138 = vmatprep.subr.bf16.mxu0 0
        %1139 = vmatpush1.bf16.msra.mxu0 0
        %1140 = vmatprep.subr.bf16.mxu0 0
        %1141 = vmatpush1.bf16.msra.mxu0 0
        %1142 = vmatprep.subr.bf16.mxu0 0
        %1143 = vmatpush1.bf16.msra.mxu0 0
        %1144 = vmatprep.subr.bf16.mxu0 0
        %1145 = vmatpush1.bf16.msra.mxu0 0
        %1146 = vmatprep.subr.bf16.mxu0 0
        %1147 = vmatpush1.bf16.msra.mxu0 0
        %1148 = vmatprep.subr.bf16.mxu0 0
        %1149 = vmatpush1.bf16.msra.mxu0 0
        %1150 = vmatprep.subr.bf16.mxu0 0
        %1151 = vmatpush1.bf16.msra.mxu0 %v1134
        %1152 = vmatprep.subr.bf16.mxu0 0
        %1153 = vmatpush2.bf16.msra.mxu0 0
        %1154 = vmatprep.subr.bf16.mxu0 0
        %1155 = vmatpush2.bf16.msra.mxu0 0
        %1156 = vmatprep.subr.bf16.mxu0 0
        %1157 = vmatpush2.bf16.msra.mxu0 0
        %1158 = vmatprep.subr.bf16.mxu0 0
        %1159 = vmatpush2.bf16.msra.mxu0 0
        %1160 = vmatprep.subr.bf16.mxu0 0
        %1161 = vmatpush2.bf16.msra.mxu0 0
        %1162 = vmatprep.subr.bf16.mxu0 0
        %1163 = vmatpush2.bf16.msra.mxu0 0
        %1164 = vmatprep.subr.bf16.mxu0 0
        %1165 = vmatpush2.bf16.msra.mxu0 0
        %1166 = vmatprep.subr.bf16.mxu0 0
        %1167 = vmatpush2.bf16.msra.mxu0 0
        %1168 = vmatprep.mubr.bf16.mxu0 0
        %1169 = vmatmul.mubr.bf16.gmra.mxu0 %v1131
        %v1170 = vpop.f32.mrf.mxu0
        %v1171 = vadd.f32 0.0, %v1170
        %v1172 = vpop.f32.mrf.mxu0
        %v1173 = vpop.f32.mrf.mxu0
        %v1174 = vpop.f32.mrf.mxu0
        %1175 = vdwg.mxu0
        %v1176 = vpack.c.bf16 %v1171, %v1171
        %v1181 = vunpack.c.l.b16 %v772
        %v1182 = vunpack.c.l.b16 %v773
        %v1183 = vunpack.c.l.b16 %v774
        %v1184 = vunpack.c.l.b16 %v775
        %v1185 = vpack.c.b16 %v1182, %v1181
        %v1186 = vpack.c.b16 %v1184, %v1183
        %v1190 = vsel %vm783, %v1176, 0
        %1192 = vmatprep.subr.bf16.mxu0 0
        %1193 = vmatpush1.bf16.msra.mxu0 0
        %1194 = vmatprep.subr.bf16.mxu0 0
        %1195 = vmatpush1.bf16.msra.mxu0 0
        %1196 = vmatprep.subr.bf16.mxu0 0
        %1197 = vmatpush1.bf16.msra.mxu0 0
        %1198 = vmatprep.subr.bf16.mxu0 0
        %1199 = vmatpush1.bf16.msra.mxu0 0
        %1200 = vmatprep.subr.bf16.mxu0 0
        %1201 = vmatpush1.bf16.msra.mxu0 0
        %1202 = vmatprep.subr.bf16.mxu0 0
        %1203 = vmatpush1.bf16.msra.mxu0 0
        %1204 = vmatprep.subr.bf16.mxu0 0
        %1205 = vmatpush1.bf16.msra.mxu0 %v1186
        %1206 = vmatprep.subr.bf16.mxu0 0
        %1207 = vmatpush1.bf16.msra.mxu0 %v1185
        %1208 = vmatprep.subr.bf16.mxu0 0
        %1209 = vmatpush2.bf16.msra.mxu0 0
        %1210 = vmatprep.subr.bf16.mxu0 0
        %1211 = vmatpush2.bf16.msra.mxu0 0
        %1212 = vmatprep.subr.bf16.mxu0 0
        %1213 = vmatpush2.bf16.msra.mxu0 0
        %1214 = vmatprep.subr.bf16.mxu0 0
        %1215 = vmatpush2.bf16.msra.mxu0 0
        %1216 = vmatprep.subr.bf16.mxu0 0
        %1217 = vmatpush2.bf16.msra.mxu0 0
        %1218 = vmatprep.subr.bf16.mxu0 0
        %1219 = vmatpush2.bf16.msra.mxu0 0
        %1220 = vmatprep.subr.bf16.mxu0 0
        %1221 = vmatpush2.bf16.msra.mxu0 0
        %1222 = vmatprep.subr.bf16.mxu0 0
        %1223 = vmatpush2.bf16.msra.mxu0 0
        %1224 = vmatprep.mubr.bf16.mxu0 0
        %1225 = vmatmul.mubr.bf16.gmra.mxu0 %v1190
        %v1226 = vpop.f32.mrf.mxu0
        %v1227 = vadd.f32 0.0, %v1226
        %v1228 = vpop.f32.mrf.mxu0
        %v1229 = vpop.f32.mrf.mxu0
        %v1230 = vpop.f32.mrf.mxu0
        %1231 = vdwg.mxu0
        %1232 = vrot.lane.b32.xlu0 %v780, 32
        %v1233 = vpop.permute.xlu0 %1232
        %1234 = vrot.lane.b32.xlu0 %v781, 32
        %v1235 = vpop.permute.xlu0 %1234
        %v1237 = vsel %vm783, %v1233, 0
        %v1240 = vsel %vm783, %v1235, 0
        %1242 = vmatprep.subr.bf16.mxu0 0
        %1243 = vmatpush1.bf16.xpose.msra.mxu0 0
        %1244 = vmatprep.subr.bf16.mxu0 0
        %1245 = vmatpush1.bf16.xpose.msra.mxu0 0
        %1246 = vmatprep.subr.bf16.mxu0 0
        %1247 = vmatpush1.bf16.xpose.msra.mxu0 0
        %1248 = vmatprep.subr.bf16.mxu0 0
        %1249 = vmatpush1.bf16.xpose.msra.mxu0 0
        %1250 = vmatprep.subr.bf16.mxu0 0
        %1251 = vmatpush1.bf16.xpose.msra.mxu0 0
        %1252 = vmatprep.subr.bf16.mxu0 0
        %1253 = vmatpush1.bf16.xpose.msra.mxu0 0
        %1254 = vmatprep.subr.bf16.mxu0 0
        %1255 = vmatpush1.bf16.xpose.msra.mxu0 0
        %1256 = vmatprep.subr.bf16.mxu0 0
        %1257 = vmatpush1.bf16.xpose.msra.mxu0 %v1240
        %1258 = vmatprep.subr.bf16.mxu0 0
        %1259 = vmatpush2.bf16.xpose.msra.mxu0 0
        %1260 = vmatprep.subr.bf16.mxu0 0
        %1261 = vmatpush2.bf16.xpose.msra.mxu0 0
        %1262 = vmatprep.subr.bf16.mxu0 0
        %1263 = vmatpush2.bf16.xpose.msra.mxu0 0
        %1264 = vmatprep.subr.bf16.mxu0 0
        %1265 = vmatpush2.bf16.xpose.msra.mxu0 0
        %1266 = vmatprep.subr.bf16.mxu0 0
        %1267 = vmatpush2.bf16.xpose.msra.mxu0 0
        %1268 = vmatprep.subr.bf16.mxu0 0
        %1269 = vmatpush2.bf16.xpose.msra.mxu0 0
        %1270 = vmatprep.subr.bf16.mxu0 0
        %1271 = vmatpush2.bf16.xpose.msra.mxu0 0
        %1272 = vmatprep.subr.bf16.mxu0 0
        %1273 = vmatpush2.bf16.xpose.msra.mxu0 0
        %1274 = vmatprep.mubr.bf16.mxu0 0
        %1275 = vmatmul.mubr.bf16.gmra.mxu0 %v1237
        %v1276 = vpop.f32.mrf.mxu0
        %v1277 = vadd.f32 0.0, %v1276
        %v1278 = vpop.f32.mrf.mxu0
        %v1279 = vpop.f32.mrf.mxu0
        %v1280 = vpop.f32.mrf.mxu0
        %1281 = vdwg.mxu0
        %v1282 = vmul.f32 %v1277, 0.17677669
        %v1283 = vsel %vm763, %v1282, -inf
        %v1284 = vsel %vm832, %v1283, -inf
        %1285 = vmax.xlane.f32.xlu0 %v1284
        %v1286 = vpop.xlane.xlu0 %1285
        %v1287 = vsub.f32 %v1283, %v1286
        %v1288 = vmul.f32 %v1287, 1.442695
        %v1289 = vpow.pop %v1288
        %v1290 = vsel %vm832, %v1289, 0.0
        %1291 = vadd.xlane.f32.xlu0 %v1290
        %v1292 = vpop.xlane.xlu0 %1291
        %v1293 = vrcp.pop %v1292
        %v1294 = vmul.f32 %v1289, %v1293
        %v1295 = vpack.c.bf16 %v1294, %v1294
        %1296 = vrot.lane.b32.xlu0 %v782, 32
        %v1297 = vpop.permute.xlu0 %1296
        %v1299 = vsel %vm832, %v1295, 0
        %v1302 = vsel %vm848, %v1297, 0
        %1304 = vmatprep.subr.bf16.mxu0 0
        %1305 = vmatpush1.bf16.msra.mxu0 0
        %1306 = vmatprep.subr.bf16.mxu0 0
        %1307 = vmatpush1.bf16.msra.mxu0 0
        %1308 = vmatprep.subr.bf16.mxu0 0
        %1309 = vmatpush1.bf16.msra.mxu0 0
        %1310 = vmatprep.subr.bf16.mxu0 0
        %1311 = vmatpush1.bf16.msra.mxu0 0
        %1312 = vmatprep.subr.bf16.mxu0 0
        %1313 = vmatpush1.bf16.msra.mxu0 0
        %1314 = vmatprep.subr.bf16.mxu0 0
        %1315 = vmatpush1.bf16.msra.mxu0 0
        %1316 = vmatprep.subr.bf16.mxu0 0
        %1317 = vmatpush1.bf16.msra.mxu0 0
        %1318 = vmatprep.subr.bf16.mxu0 0
        %1319 = vmatpush1.bf16.msra.mxu0 %v1302
        %1320 = vmatprep.subr.bf16.mxu0 0
        %1321 = vmatpush2.bf16.msra.mxu0 0
        %1322 = vmatprep.subr.bf16.mxu0 0
        %1323 = vmatpush2.bf16.msra.mxu0 0
        %1324 = vmatprep.subr.bf16.mxu0 0
        %1325 = vmatpush2.bf16.msra.mxu0 0
        %1326 = vmatprep.subr.bf16.mxu0 0
        %1327 = vmatpush2.bf16.msra.mxu0 0
        %1328 = vmatprep.subr.bf16.mxu0 0
        %1329 = vmatpush2.bf16.msra.mxu0 0
        %1330 = vmatprep.subr.bf16.mxu0 0
        %1331 = vmatpush2.bf16.msra.mxu0 0
        %1332 = vmatprep.subr.bf16.mxu0 0
        %1333 = vmatpush2.bf16.msra.mxu0 0
        %1334 = vmatprep.subr.bf16.mxu0 0
        %1335 = vmatpush2.bf16.msra.mxu0 0
        %1336 = vmatprep.mubr.bf16.mxu0 0
        %1337 = vmatmul.mubr.bf16.gmra.mxu0 %v1299
        %v1338 = vpop.f32.mrf.mxu0
        %v1339 = vadd.f32 0.0, %v1338
        %v1340 = vpop.f32.mrf.mxu0
        %v1341 = vpop.f32.mrf.mxu0
        %v1342 = vpop.f32.mrf.mxu0
        %1343 = vdwg.mxu0
        %v1344 = vpack.c.bf16 %v1339, %v1339
        %v1349 = vunpack.c.l.b16 %v776
        %v1350 = vunpack.c.l.b16 %v777
        %v1351 = vunpack.c.l.b16 %v778
        %v1352 = vunpack.c.l.b16 %v779
        %v1353 = vpack.c.b16 %v1350, %v1349
        %v1354 = vpack.c.b16 %v1352, %v1351
        %v1358 = vsel %vm783, %v1344, 0
        %1360 = vmatprep.subr.bf16.mxu0 0
        %1361 = vmatpush1.bf16.msra.mxu0 0
        %1362 = vmatprep.subr.bf16.mxu0 0
        %1363 = vmatpush1.bf16.msra.mxu0 0
        %1364 = vmatprep.subr.bf16.mxu0 0
        %1365 = vmatpush1.bf16.msra.mxu0 0
        %1366 = vmatprep.subr.bf16.mxu0 0
        %1367 = vmatpush1.bf16.msra.mxu0 0
        %1368 = vmatprep.subr.bf16.mxu0 0
        %1369 = vmatpush1.bf16.msra.mxu0 0
        %1370 = vmatprep.subr.bf16.mxu0 0
        %1371 = vmatpush1.bf16.msra.mxu0 0
        %1372 = vmatprep.subr.bf16.mxu0 0
        %1373 = vmatpush1.bf16.msra.mxu0 %v1354
        %1374 = vmatprep.subr.bf16.mxu0 0
        %1375 = vmatpush1.bf16.msra.mxu0 %v1353
        %1376 = vmatprep.subr.bf16.mxu0 0
        %1377 = vmatpush2.bf16.msra.mxu0 0
        %1378 = vmatprep.subr.bf16.mxu0 0
        %1379 = vmatpush2.bf16.msra.mxu0 0
        %1380 = vmatprep.subr.bf16.mxu0 0
        %1381 = vmatpush2.bf16.msra.mxu0 0
        %1382 = vmatprep.subr.bf16.mxu0 0
        %1383 = vmatpush2.bf16.msra.mxu0 0
        %1384 = vmatprep.subr.bf16.mxu0 0
        %1385 = vmatpush2.bf16.msra.mxu0 0
        %1386 = vmatprep.subr.bf16.mxu0 0
        %1387 = vmatpush2.bf16.msra.mxu0 0
        %1388 = vmatprep.subr.bf16.mxu0 0
        %1389 = vmatpush2.bf16.msra.mxu0 0
        %1390 = vmatprep.subr.bf16.mxu0 0
        %1391 = vmatpush2.bf16.msra.mxu0 0
        %1392 = vmatprep.mubr.bf16.mxu0 0
        %1393 = vmatmul.mubr.bf16.gmra.mxu0 %v1358
        %v1394 = vpop.f32.mrf.mxu0
        %v1395 = vadd.f32 0.0, %v1394
        %v1396 = vpop.f32.mrf.mxu0
        %v1397 = vpop.f32.mrf.mxu0
        %v1398 = vpop.f32.mrf.mxu0
        %1399 = vdwg.mxu0
        %v1404 = vunpack.c.l.b16 %v764
        %v1405 = vunpack.c.l.b16 %v765
        %v1406 = vunpack.c.l.b16 %v766
        %v1407 = vunpack.c.l.b16 %v767
        %v1408 = vpack.c.b16 %v1405, %v1404
        %v1409 = vpack.c.b16 %v1407, %v1406
        %v1413 = vsel %vm783, %v892, 0
        %1415 = vmatprep.subr.bf16.mxu0 0
        %1416 = vmatpush1.bf16.msra.mxu0 0
        %1417 = vmatprep.subr.bf16.mxu0 0
        %1418 = vmatpush1.bf16.msra.mxu0 0
        %1419 = vmatprep.subr.bf16.mxu0 0
        %1420 = vmatpush1.bf16.msra.mxu0 0
        %1421 = vmatprep.subr.bf16.mxu0 0
        %1422 = vmatpush1.bf16.msra.mxu0 0
        %1423 = vmatprep.subr.bf16.mxu0 0
        %1424 = vmatpush1.bf16.msra.mxu0 0
        %1425 = vmatprep.subr.bf16.mxu0 0
        %1426 = vmatpush1.bf16.msra.mxu0 0
        %1427 = vmatprep.subr.bf16.mxu0 0
        %1428 = vmatpush1.bf16.msra.mxu0 %v1409
        %1429 = vmatprep.subr.bf16.mxu0 0
        %1430 = vmatpush1.bf16.msra.mxu0 %v1408
        %1431 = vmatprep.subr.bf16.mxu0 0
        %1432 = vmatpush2.bf16.msra.mxu0 0
        %1433 = vmatprep.subr.bf16.mxu0 0
        %1434 = vmatpush2.bf16.msra.mxu0 0
        %1435 = vmatprep.subr.bf16.mxu0 0
        %1436 = vmatpush2.bf16.msra.mxu0 0
        %1437 = vmatprep.subr.bf16.mxu0 0
        %1438 = vmatpush2.bf16.msra.mxu0 0
        %1439 = vmatprep.subr.bf16.mxu0 0
        %1440 = vmatpush2.bf16.msra.mxu0 0
        %1441 = vmatprep.subr.bf16.mxu0 0
        %1442 = vmatpush2.bf16.msra.mxu0 0
        %1443 = vmatprep.subr.bf16.mxu0 0
        %1444 = vmatpush2.bf16.msra.mxu0 0
        %1445 = vmatprep.subr.bf16.mxu0 0
        %1446 = vmatpush2.bf16.msra.mxu0 0
        %1447 = vmatprep.mubr.bf16.mxu0 0
        %1448 = vmatmul.mubr.bf16.gmra.mxu0 %v1413
        %v1449 = vpop.f32.mrf.mxu0
        %v1450 = vadd.f32 %v1059, %v1449
        %v1451 = vpop.f32.mrf.mxu0
        %v1452 = vpop.f32.mrf.mxu0
        %v1453 = vpop.f32.mrf.mxu0
        %1454 = vdwg.mxu0
        %v1455 = vadd.f32 %v1450, %v1227
        %v1456 = vadd.f32 %v1455, %v1395
        %v1457 = vld [vmem:[%s5] sm:$0x1]
        %v1459 = vlaneseq
        %v1460 = vshrl.u32 %v1459, 7
        %v1461 = vsub.s32 0, %v1460
        %v1462 = vrot.slane %v1457, %v1461
        %v1464 = vadd.f32 %v1456, %v1462
        %v1465 = vadd.f32 %v488, %v1464
        %1466 = vadd.xlane.f32.xlu0 %v1465
        %v1467 = vpop.xlane.xlu0 %1466
        %v1468 = vmul.f32 %v1467, %v491
        %v1469 = vsub.f32 %v1465, %v1468
        %v1470 = vmul.f32 %v1469, %v1469
        %1471 = vadd.xlane.f32.xlu0 %v1470
        %v1472 = vpop.xlane.xlu0 %1471
        %v1473 = vmul.f32 %v1472, %v491
        %v1474 = vadd.f32 %v1473, 1e-05
        %v1475 = vrsqrt.pop %v1474
        %v1476 = vmul.f32 %v1469, %v1475
        %v1477 = vld [vmem:[%s6] sm:$0x1]
        %v1479 = vlaneseq
        %v1480 = vshrl.u32 %v1479, 7
        %v1481 = vsub.s32 0, %v1480
        %v1482 = vrot.slane %v1477, %v1481
        %v1484 = vmul.f32 %v1476, %v1482
        %v1485 = vld [vmem:[%s7] sm:$0x1]
        %v1487 = vlaneseq
        %v1488 = vshrl.u32 %v1487, 7
        %v1489 = vsub.s32 0, %v1488
        %v1490 = vrot.slane %v1485, %v1489
        %v1492 = vadd.f32 %v1484, %v1490
        %v1493 = vpack.c.bf16 %v1492, %v1492
        %v1494 = vld [vmem:[#allocation8] sm:$0xff]
        %v1495 = vld [vmem:[#allocation8 + $0x8] sm:$0xff]
        %v1496 = vld [vmem:[#allocation8 + $0x10] sm:$0xff]
        %v1497 = vld [vmem:[#allocation8 + $0x18] sm:$0xff]
        %v1498 = vld [vmem:[#allocation8 + $0x20] sm:$0xff]
        %v1499 = vld [vmem:[#allocation8 + $0x28] sm:$0xff]
        %v1500 = vld [vmem:[#allocation8 + $0x30] sm:$0xff]
        %v1501 = vld [vmem:[#allocation8 + $0x38] sm:$0xff]
        %v1502 = vld [vmem:[#allocation8 + $0x40] sm:$0xff]
        %v1503 = vld [vmem:[#allocation8 + $0x48] sm:$0xff]
        %v1504 = vld [vmem:[#allocation8 + $0x50] sm:$0xff]
        %v1505 = vld [vmem:[#allocation8 + $0x58] sm:$0xff]
        %v1506 = vld [vmem:[#allocation8 + $0x60] sm:$0xff]
        %v1507 = vld [vmem:[#allocation8 + $0x68] sm:$0xff]
        %v1508 = vld [vmem:[#allocation8 + $0x70] sm:$0xff]
        %v1509 = vld [vmem:[#allocation8 + $0x78] sm:$0xff]
        %v1510 = vld [vmem:[%s9] sm:$0x3]
        %v1512 = vlaneseq
        %v1513 = vshrl.u32 %v1512, 7
        %v1514 = vsub.s32 0, %v1513
        %v1515 = vrot.slane %v1510, %v1514
        %v1516 = vlaneseq
        %v1517 = vshrl.u32 %v1516, 7
        %v1518 = vsub.s32 1, %v1517
        %v1519 = vrot.slane %v1510, %v1518
        %v1538 = vunpack.c.l.b16 %v1494
        %v1539 = vunpack.c.h.b16 %v1494
        %v1540 = vunpack.c.l.b16 %v1495
        %v1541 = vunpack.c.h.b16 %v1495
        %v1542 = vunpack.c.l.b16 %v1496
        %v1543 = vunpack.c.h.b16 %v1496
        %v1544 = vunpack.c.l.b16 %v1497
        %v1545 = vunpack.c.h.b16 %v1497
        %v1546 = vunpack.c.l.b16 %v1498
        %v1547 = vunpack.c.h.b16 %v1498
        %v1548 = vunpack.c.l.b16 %v1499
        %v1549 = vunpack.c.h.b16 %v1499
        %v1550 = vunpack.c.l.b16 %v1500
        %v1551 = vunpack.c.h.b16 %v1500
        %v1552 = vunpack.c.l.b16 %v1501
        %v1553 = vunpack.c.h.b16 %v1501
        %v1554 = vunpack.c.l.b16 %v1502
        %v1555 = vunpack.c.h.b16 %v1502
        %v1556 = vunpack.c.l.b16 %v1503
        %v1557 = vunpack.c.h.b16 %v1503
        %v1558 = vunpack.c.l.b16 %v1504
        %v1559 = vunpack.c.h.b16 %v1504
        %v1560 = vunpack.c.l.b16 %v1505
        %v1561 = vunpack.c.h.b16 %v1505
        %v1562 = vunpack.c.l.b16 %v1506
        %v1563 = vunpack.c.h.b16 %v1506
        %v1564 = vunpack.c.l.b16 %v1507
        %v1565 = vunpack.c.h.b16 %v1507
        %v1566 = vunpack.c.l.b16 %v1508
        %v1567 = vunpack.c.h.b16 %v1508
        %v1568 = vunpack.c.l.b16 %v1509
        %v1569 = vunpack.c.h.b16 %v1509
        %v1570 = vpack.c.b16 %v1540, %v1538
        %v1571 = vpack.c.b16 %v1541, %v1539
        %v1572 = vpack.c.b16 %v1544, %v1542
        %v1573 = vpack.c.b16 %v1545, %v1543
        %v1574 = vpack.c.b16 %v1548, %v1546
        %v1575 = vpack.c.b16 %v1549, %v1547
        %v1576 = vpack.c.b16 %v1552, %v1550
        %v1577 = vpack.c.b16 %v1553, %v1551
        %v1578 = vpack.c.b16 %v1556, %v1554
        %v1579 = vpack.c.b16 %v1557, %v1555
        %v1580 = vpack.c.b16 %v1560, %v1558
        %v1581 = vpack.c.b16 %v1561, %v1559
        %v1582 = vpack.c.b16 %v1564, %v1562
        %v1583 = vpack.c.b16 %v1565, %v1563
        %v1584 = vpack.c.b16 %v1568, %v1566
        %v1585 = vpack.c.b16 %v1569, %v1567
        %1602 = vmatprep.subr.bf16.mxu0 %v1585
        %1603 = vmatpush1.bf16.msra.mxu0 %v1584
        %1604 = vmatprep.subr.bf16.mxu0 %v1583
        %1605 = vmatpush1.bf16.msra.mxu0 %v1582
        %1606 = vmatprep.subr.bf16.mxu0 %v1581
        %1607 = vmatpush1.bf16.msra.mxu0 %v1580
        %1608 = vmatprep.subr.bf16.mxu0 %v1579
        %1609 = vmatpush1.bf16.msra.mxu0 %v1578
        %1610 = vmatprep.subr.bf16.mxu0 %v1577
        %1611 = vmatpush1.bf16.msra.mxu0 %v1576
        %1612 = vmatprep.subr.bf16.mxu0 %v1575
        %1613 = vmatpush1.bf16.msra.mxu0 %v1574
        %1614 = vmatprep.subr.bf16.mxu0 %v1573
        %1615 = vmatpush1.bf16.msra.mxu0 %v1572
        %1616 = vmatprep.subr.bf16.mxu0 %v1571
        %1617 = vmatpush1.bf16.msra.mxu0 %v1570
        %1618 = vmatprep.subr.bf16.mxu0 0
        %1619 = vmatpush2.bf16.msra.mxu0 0
        %1620 = vmatprep.subr.bf16.mxu0 0
        %1621 = vmatpush2.bf16.msra.mxu0 0
        %1622 = vmatprep.subr.bf16.mxu0 0
        %1623 = vmatpush2.bf16.msra.mxu0 0
        %1624 = vmatprep.subr.bf16.mxu0 0
        %1625 = vmatpush2.bf16.msra.mxu0 0
        %1626 = vmatprep.subr.bf16.mxu0 0
        %1627 = vmatpush2.bf16.msra.mxu0 0
        %1628 = vmatprep.subr.bf16.mxu0 0
        %1629 = vmatpush2.bf16.msra.mxu0 0
        %1630 = vmatprep.subr.bf16.mxu0 0
        %1631 = vmatpush2.bf16.msra.mxu0 0
        %1632 = vmatprep.subr.bf16.mxu0 0
        %1633 = vmatpush2.bf16.msra.mxu0 0
        %1634 = vmatprep.mubr.bf16.mxu0 0
        %1635 = vmatmul.mubr.bf16.gmra.mxu0 %v1493
        %v1636 = vpop.f32.mrf.mxu0
        %v1637 = vadd.f32 %v1515, %v1636
        %v1638 = vpop.f32.mrf.mxu0
        %v1639 = vadd.f32 %v1519, %v1638
        %v1640 = vpop.f32.mrf.mxu0
        %v1641 = vpop.f32.mrf.mxu0
        %1642 = vdwg.mxu0
        %v1643 = vmax.f32 %v1637, 0.0
        %v1644 = vmax.f32 %v1639, 0.0
        %v1645 = vpack.c.bf16 %v1643, %v1643
        %v1646 = vpack.c.bf16 %v1644, %v1644
        %v1647 = vld [vmem:[#allocation10] sm:$0xf]
        %v1648 = vld [vmem:[#allocation10 + $0x4] sm:$0xf]
        %v1649 = vld [vmem:[#allocation10 + $0x8] sm:$0xf]
        %v1650 = vld [vmem:[#allocation10 + $0xc] sm:$0xf]
        %v1651 = vld [vmem:[#allocation10 + $0x10] sm:$0xf]
        %v1652 = vld [vmem:[#allocation10 + $0x14] sm:$0xf]
        %v1653 = vld [vmem:[#allocation10 + $0x18] sm:$0xf]
        %v1654 = vld [vmem:[#allocation10 + $0x1c] sm:$0xf]
        %v1655 = vld [vmem:[#allocation10 + $0x20] sm:$0xf]
        %v1656 = vld [vmem:[#allocation10 + $0x24] sm:$0xf]
        %v1657 = vld [vmem:[#allocation10 + $0x28] sm:$0xf]
        %v1658 = vld [vmem:[#allocation10 + $0x2c] sm:$0xf]
        %v1659 = vld [vmem:[#allocation10 + $0x30] sm:$0xf]
        %v1660 = vld [vmem:[#allocation10 + $0x34] sm:$0xf]
        %v1661 = vld [vmem:[#allocation10 + $0x38] sm:$0xf]
        %v1662 = vld [vmem:[#allocation10 + $0x3c] sm:$0xf]
        %v1663 = vld [vmem:[#allocation10 + $0x40] sm:$0xf]
        %v1664 = vld [vmem:[#allocation10 + $0x44] sm:$0xf]
        %v1665 = vld [vmem:[#allocation10 + $0x48] sm:$0xf]
        %v1666 = vld [vmem:[#allocation10 + $0x4c] sm:$0xf]
        %v1667 = vld [vmem:[#allocation10 + $0x50] sm:$0xf]
        %v1668 = vld [vmem:[#allocation10 + $0x54] sm:$0xf]
        %v1669 = vld [vmem:[#allocation10 + $0x58] sm:$0xf]
        %v1670 = vld [vmem:[#allocation10 + $0x5c] sm:$0xf]
        %v1671 = vld [vmem:[#allocation10 + $0x60] sm:$0xf]
        %v1672 = vld [vmem:[#allocation10 + $0x64] sm:$0xf]
        %v1673 = vld [vmem:[#allocation10 + $0x68] sm:$0xf]
        %v1674 = vld [vmem:[#allocation10 + $0x6c] sm:$0xf]
        %v1675 = vld [vmem:[#allocation10 + $0x70] sm:$0xf]
        %v1676 = vld [vmem:[#allocation10 + $0x74] sm:$0xf]
        %v1677 = vld [vmem:[#allocation10 + $0x78] sm:$0xf]
        %v1678 = vld [vmem:[#allocation10 + $0x7c] sm:$0xf]
        %v1679 = vld [vmem:[%s11] sm:$0x1]
        %v1681 = vlaneseq
        %v1682 = vshrl.u32 %v1681, 7
        %v1683 = vsub.s32 0, %v1682
        %v1684 = vrot.slane %v1679, %v1683
        %v1718 = vunpack.c.l.b16 %v1647
        %v1719 = vunpack.c.l.b16 %v1648
        %v1720 = vunpack.c.l.b16 %v1649
        %v1721 = vunpack.c.l.b16 %v1650
        %v1722 = vunpack.c.l.b16 %v1651
        %v1723 = vunpack.c.l.b16 %v1652
        %v1724 = vunpack.c.l.b16 %v1653
        %v1725 = vunpack.c.l.b16 %v1654
        %v1726 = vunpack.c.l.b16 %v1655
        %v1727 = vunpack.c.l.b16 %v1656
        %v1728 = vunpack.c.l.b16 %v1657
        %v1729 = vunpack.c.l.b16 %v1658
        %v1730 = vunpack.c.l.b16 %v1659
        %v1731 = vunpack.c.l.b16 %v1660
        %v1732 = vunpack.c.l.b16 %v1661
        %v1733 = vunpack.c.l.b16 %v1662
        %v1734 = vunpack.c.l.b16 %v1663
        %v1735 = vunpack.c.l.b16 %v1664
        %v1736 = vunpack.c.l.b16 %v1665
        %v1737 = vunpack.c.l.b16 %v1666
        %v1738 = vunpack.c.l.b16 %v1667
        %v1739 = vunpack.c.l.b16 %v1668
        %v1740 = vunpack.c.l.b16 %v1669
        %v1741 = vunpack.c.l.b16 %v1670
        %v1742 = vunpack.c.l.b16 %v1671
        %v1743 = vunpack.c.l.b16 %v1672
        %v1744 = vunpack.c.l.b16 %v1673
        %v1745 = vunpack.c.l.b16 %v1674
        %v1746 = vunpack.c.l.b16 %v1675
        %v1747 = vunpack.c.l.b16 %v1676
        %v1748 = vunpack.c.l.b16 %v1677
        %v1749 = vunpack.c.l.b16 %v1678
        %v1750 = vpack.c.b16 %v1719, %v1718
        %v1751 = vpack.c.b16 %v1721, %v1720
        %v1752 = vpack.c.b16 %v1723, %v1722
        %v1753 = vpack.c.b16 %v1725, %v1724
        %v1754 = vpack.c.b16 %v1727, %v1726
        %v1755 = vpack.c.b16 %v1729, %v1728
        %v1756 = vpack.c.b16 %v1731, %v1730
        %v1757 = vpack.c.b16 %v1733, %v1732
        %v1758 = vpack.c.b16 %v1735, %v1734
        %v1759 = vpack.c.b16 %v1737, %v1736
        %v1760 = vpack.c.b16 %v1739, %v1738
        %v1761 = vpack.c.b16 %v1741, %v1740
        %v1762 = vpack.c.b16 %v1743, %v1742
        %v1763 = vpack.c.b16 %v1745, %v1744
        %v1764 = vpack.c.b16 %v1747, %v1746
        %v1765 = vpack.c.b16 %v1749, %v1748
        %1782 = vmatprep.subr.bf16.mxu0 0
        %1783 = vmatpush1.bf16.msra.mxu0 %v1757
        %1784 = vmatprep.subr.bf16.mxu0 0
        %1785 = vmatpush1.bf16.msra.mxu0 %v1756
        %1786 = vmatprep.subr.bf16.mxu0 0
        %1787 = vmatpush1.bf16.msra.mxu0 %v1755
        %1788 = vmatprep.subr.bf16.mxu0 0
        %1789 = vmatpush1.bf16.msra.mxu0 %v1754
        %1790 = vmatprep.subr.bf16.mxu0 0
        %1791 = vmatpush1.bf16.msra.mxu0 %v1753
        %1792 = vmatprep.subr.bf16.mxu0 0
        %1793 = vmatpush1.bf16.msra.mxu0 %v1752
        %1794 = vmatprep.subr.bf16.mxu0 0
        %1795 = vmatpush1.bf16.msra.mxu0 %v1751
        %1796 = vmatprep.subr.bf16.mxu0 0
        %1797 = vmatpush1.bf16.msra.mxu0 %v1750
        %1798 = vmatprep.subr.bf16.mxu0 0
        %1799 = vmatpush2.bf16.msra.mxu0 %v1765
        %1800 = vmatprep.subr.bf16.mxu0 0
        %1801 = vmatpush2.bf16.msra.mxu0 %v1764
        %1802 = vmatprep.subr.bf16.mxu0 0
        %1803 = vmatpush2.bf16.msra.mxu0 %v1763
        %1804 = vmatprep.subr.bf16.mxu0 0
        %1805 = vmatpush2.bf16.msra.mxu0 %v1762
        %1806 = vmatprep.subr.bf16.mxu0 0
        %1807 = vmatpush2.bf16.msra.mxu0 %v1761
        %1808 = vmatprep.subr.bf16.mxu0 0
        %1809 = vmatpush2.bf16.msra.mxu0 %v1760
        %1810 = vmatprep.subr.bf16.mxu0 0
        %1811 = vmatpush2.bf16.msra.mxu0 %v1759
        %1812 = vmatprep.subr.bf16.mxu0 0
        %1813 = vmatpush2.bf16.msra.mxu0 %v1758
        %1814 = vmatprep.mubr.bf16.mxu0 %v1646
        %1815 = vmatmul.mubr.bf16.gmra.mxu0 %v1645
        %v1816 = vpop.f32.mrf.mxu0
        %v1817 = vadd.f32 %v1684, %v1816
        %v1818 = vpop.f32.mrf.mxu0
        %v1819 = vpop.f32.mrf.mxu0
        %v1820 = vpop.f32.mrf.mxu0
        %1821 = vdwg.mxu0
        %v1822 = vadd.f32 %v1465, %v1817
        %1823 = vst [vmem:[%s486] sm:$0xff] %v1822
        %s1824 = sand.u32 %s296, 1
        %s1825 = scalar_lea.sflag [#allocation4], %s1824
        %s1826 = sand.u32 %s296, 1
        %s1827 = smul.addr %s1826, 8
        %s1828 = scalar_lea.vmem [#allocation11], %s1827
        // Predicated region
        $region89: #{tpu_custom_call.1} parent=67 // pred_check
          %p1829 = pneg %p306
        $region90: #{tpu_custom_call.1} parent=67 // pred_check_branch
          %1831 = sbr.rel (%p1829) target = $region92
        $region91: #{tpu_custom_call.1} parent=67 // pred_region
          %s1833 = ssub.s32 128, 128
          %1834 = vsyncadd %s1825, %s1833
          %s1835 = smul.addr %s31, 128
          %s1836 = scalar_lea.hbm %s12, %s1835
          %s1838 = sshll.u32 %s1828, 4
          %s1839 = int_to_ptr.vmem [resolvable:$true] %s1838
          %1841 = dma.vmem_to_hbm [thread:$0]  %s1839, 128, %s1836, %s1825
        $region92: #{tpu_custom_call.1} parent=67 // pred_fallthru
          _
      $region68: #{tpu_custom_call.1} parent=5 // pred_fallthru
        _
      %p1842 = scmp.le.s32.totalorder 2, %s26
      // Predicated region
      $region93: #{tpu_custom_call.1} parent=5 // pred_check
        %p1843 = pneg %p1842
      $region94: #{tpu_custom_call.1} parent=5 // pred_check_branch
        %1845 = sbr.rel (%p1843) target = $region96
      $region95: #{tpu_custom_call.1} parent=5 // pred_region
        %s1846 = ssub.s32 %s26, 2
        // Predicated region
        $region97: #{tpu_custom_call.1} parent=95 // pred_check
          %p1847 = pneg %p312
        $region98: #{tpu_custom_call.1} parent=95 // pred_check_branch
          %1849 = sbr.rel (%p1847) target = $region100
        $region99: #{tpu_custom_call.1} parent=95 // pred_region
          %s1850 = sand.u32 %s297, 1
          %s1851 = scalar_lea.sflag [#allocation4], %s1850
          %s1852 = sand.u32 %s297, 1
          %s1853 = smul.addr %s1852, 8
          %s1854 = scalar_lea.vmem [#allocation11], %s1853
          %1855 = dma.done %s1851, 128
        $region100: #{tpu_custom_call.1} parent=95 // pred_fallthru
          _
      $region96: #{tpu_custom_call.1} parent=5 // pred_fallthru
        _
    $region6: #{tpu_custom_call.1} parent=1 // loop_footer
      %s30 = sadd.s32 1, %s26
    $region7: #{tpu_custom_call.1} parent=1 // loop_footer_branch
      %25 = sbr.rel target = $region3
    $region8: #{tpu_custom_call.1} parent=1 // loop_exit
      _
    %1856 = vsyncpa [#allocation3], 1
    %s1857 = scalar_lea.sflag [#allocation3], 1
    %1858 = vsyncpa %s1857, 1
    %1859 = vsyncpa [#allocation6], 1
    %1860 = vsyncpa [#allocation9], 1
    %1861 = vsyncpa [#allocation4], 1
    %s1862 = scalar_lea.sflag [#allocation4], 1
    %1863 = vsyncpa %s1862, 1

</llo_original>
